<compile_context>
chip_gen: v5e
topology: v5e:2x2
jax: 0.10.0
libtpu: 0.0.40
codegen_flags: <defaults>
</compile_context>

<pallas_src>
import functools

import jax
import jax.numpy as jnp
from jax.experimental import pallas as pl
from jax.experimental.pallas import tpu as pltpu


# ---------------------------------------------------------------------------
# Model dimensions (PyTorch module) and TPU-padded dimensions.
# ---------------------------------------------------------------------------
IN_DIM = 784          # 28*28, flattened MNIST
HIDDEN = 200
OUT_DIM = 10
N_HID_LINEARS = 6     # layer3, 5, 7, 9, 11, 13  (200 -> 200)
N_MASKED = 7          # linear_masked_relu 2, 4, 6, 8, 10, 12, 14

IN_PAD = 896          # 7 * 128 lanes
HID_PAD = 256         # 2 * 128 lanes (one native 256-wide MXU tile on v6e/v7x)
OUT_PAD = 128         # lane-dense final store


def _round_up(x, m):
    return (x + m - 1) // m * m


# ---------------------------------------------------------------------------
# Fused kernel: 8 matmuls + 7 masked-ReLUs, all in VMEM, one launch.
# ---------------------------------------------------------------------------
def _mlp_kernel(x_ref, w_in_ref, b_in_ref, w_h_ref, b_h_ref,
                w_out_ref, b_out_ref, om_ref, sm_ref, lbm_ref, o_ref):
    # Layer 1: (TB, 896) @ (896, 256)
    z = jnp.dot(x_ref[...], w_in_ref[...],
                preferred_element_type=jnp.float32) + b_in_ref[...]
    h = jnp.maximum(z, 0.0) * om_ref[0] + z * sm_ref[0] + lbm_ref[0]

    # Layers 3..13: six (TB, 256) @ (256, 256), each followed by masked ReLU.
    for i in range(N_HID_LINEARS):
        z = jnp.dot(h, w_h_ref[i],
                    preferred_element_type=jnp.float32) + b_h_ref[i]
        h = jnp.maximum(z, 0.0) * om_ref[i + 1] + z * sm_ref[i + 1] + lbm_ref[i + 1]

    # Layer 15: (TB, 256) @ (256, 128)   (lane-dense output tile)
    z = jnp.dot(h, w_out_ref[...],
                preferred_element_type=jnp.float32) + b_out_ref[...]
    o_ref[...] = z.astype(o_ref.dtype)


def _fused_mlp(x_pad, w_in, b_in, w_h, b_h, w_out, b_out, om, sm, lbm, *, tb):
    """x_pad: (B_pad, IN_PAD) f32, B_pad % tb == 0.  Returns (B_pad, OUT_PAD)."""
    b_pad = x_pad.shape[0]
    grid = (b_pad // tb,)

    def const_spec(shape):
        return pl.BlockSpec(shape, lambda i: (0,) * len(shape))

    return pl.pallas_call(
        _mlp_kernel,
        out_shape=jax.ShapeDtypeStruct((b_pad, OUT_PAD), jnp.float32),
        grid=grid,
        in_specs=[
            pl.BlockSpec((tb, IN_PAD), lambda i: (i, 0)),          # x (batch-tiled)
            const_spec((IN_PAD, HID_PAD)),                         # w_in
            const_spec((1, HID_PAD)),                              # b_in
            const_spec((N_HID_LINEARS, HID_PAD, HID_PAD)),         # w_hidden (stacked)
            const_spec((N_HID_LINEARS, 1, HID_PAD)),               # b_hidden
            const_spec((HID_PAD, OUT_PAD)),                        # w_out
            const_spec((1, OUT_PAD)),                              # b_out
            const_spec((N_MASKED, 1, HID_PAD)),                    # 1 - mask
            const_spec((N_MASKED, 1, HID_PAD)),                    # slope * mask
            const_spec((N_MASKED, 1, HID_PAD)),                    # bias * mask
        ],
        out_specs=pl.BlockSpec((tb, OUT_PAD), lambda i: (i, 0)),
        compiler_params=pltpu.CompilerParams(
            dimension_semantics=("parallel",)),
    )(x_pad, w_in, b_in, w_h, b_h, w_out, b_out, om, sm, lbm)


# ---------------------------------------------------------------------------
# Parameter construction (mirrors mnist_8_200_graft __init__ shapes).
# ---------------------------------------------------------------------------
def init_params(key, v=1.0, b=0.0, random_mask=False, dtype=jnp.float32):
    """8 linears (784->200, 6x 200->200, 200->10) + 7 masked-ReLU param sets.

    Weights are stored pre-transposed as (IN, OUT) so the kernel computes
    x @ W_t + b, matching torch.nn.Linear's x @ W.T + b.
    """
    dims = [(IN_DIM, HIDDEN)] + [(HIDDEN, HIDDEN)] * N_HID_LINEARS \
        + [(HIDDEN, OUT_DIM)]
    linears = []
    for (din, dout) in dims:
        key, kw, kb = jax.random.split(key, 3)
        scale = 1.0 / jnp.sqrt(jnp.asarray(din, dtype))
        w_t = jax.random.uniform(kw, (din, dout), dtype, -1.0, 1.0) * scale
        bias = jax.random.uniform(kb, (dout,), dtype, -1.0, 1.0) * scale
        linears.append((w_t, bias))

    mrelus = []
    for _ in range(N_MASKED):
        if random_mask:
            key, km = jax.random.split(key)
            mask = (jax.random.uniform(km, (HIDDEN,), dtype) < 0.5).astype(dtype)
        else:
            mask = jnp.zeros((HIDDEN,), dtype)        # module registers zeros buffer
        slope = jnp.full((HIDDEN,), v, dtype)
        lbias = jnp.full((HIDDEN,), b, dtype)
        mrelus.append((mask, slope, lbias))
    return linears, mrelus


def _pad2(a, rows, cols):
    out = jnp.zeros((rows, cols), a.dtype)
    return out.at[:a.shape[0], :a.shape[1]].set(a)


def prepare_fused_params(linears, mrelus):
    """Pad / transpose / stack / pre-combine parameters for the fused kernel."""
    w0, b0 = linears[0]
    w_in = _pad2(w0, IN_PAD, HID_PAD)
    b_in = _pad2(b0.reshape(1, -1), 1, HID_PAD)

    w_h = jnp.stack([_pad2(linears[i][0], HID_PAD, HID_PAD)
                     for i in range(1, 1 + N_HID_LINEARS)])
    b_h = jnp.stack([_pad2(linears[i][1].reshape(1, -1), 1, HID_PAD)
                     for i in range(1, 1 + N_HID_LINEARS)])

    w_last, b_last = linears[-1]
    w_out = _pad2(w_last, HID_PAD, OUT_PAD)
    b_out = _pad2(b_last.reshape(1, -1), 1, OUT_PAD)

    om_l, sm_l, lbm_l = [], [], []
    for (mask, slope, lbias) in mrelus:
        m_pad = _pad2(mask.reshape(1, -1), 1, HID_PAD)          # 0 in pad lanes
        om_l.append(1.0 - m_pad)                                 # relu(0)*1 = 0 there
        sm_l.append(_pad2((slope * mask).reshape(1, -1), 1, HID_PAD))
        lbm_l.append(_pad2((lbias * mask).reshape(1, -1), 1, HID_PAD))
    om = jnp.stack(om_l)
    sm = jnp.stack(sm_l)
    lbm = jnp.stack(lbm_l)
    return (w_in, b_in, w_h, b_h, w_out, b_out, om, sm, lbm)


# ---------------------------------------------------------------------------
# Forward passes.
# ---------------------------------------------------------------------------
@jax.jit
def forward(x_nchw, fused_params):
    """Equivalent of mnist_8_200_graft.forward on NCHW input (B, 1, 28, 28)."""
    B = x_nchw.shape[0]
    x = x_nchw.reshape(B, -1).astype(jnp.float32)     # Flatten (same order as torch)

    # Batch tile: full (padded) batch for small B; 256-row tiles for large B so
    # the "parallel" grid axis can shard across TensorCores (v7x megacore).
    tb = 256 if B >= 256 else _round_up(max(B, 1), 8)
    b_pad = _round_up(B, tb)

    x_pad = jnp.zeros((b_pad, IN_PAD), jnp.float32).at[:B, :IN_DIM].set(x)
    out_pad = _fused_mlp(x_pad, *fused_params, tb=tb)
    return out_pad[:B, :OUT_DIM]


def forward_reference(x_nchw, linears, mrelus):
    """Pure-JAX reference (unpadded) for correctness checking."""
    B = x_nchw.shape[0]
    out = x_nchw.reshape(B, -1).astype(jnp.float32)
    for i in range(N_MASKED):
        w_t, bias = linears[i]
        mask, slope, lbias = mrelus[i]
        z = out @ w_t + bias
        out = jnp.maximum(z, 0.0) * (1.0 - mask) + (z * slope + lbias) * mask
    w_t, bias = linears[-1]
    return out @ w_t + bias


# ---------------------------------------------------------------------------
if __name__ == "__main__":
    key = jax.random.PRNGKey(0)
    kx, kp1, kp2 = jax.random.split(key, 3)

    # MNIST-shaped input: NCHW (batch=2, channels=1, 28x28) -> flattens to 784.
    x = jax.random.normal(kx, (2, 1, 28, 28), dtype=jnp.float32)

    # Test 1: faithful module init (mask buffer = zeros -> plain ReLU path).
    linears, mrelus = init_params(kp1, v=1.0, b=0.0, random_mask=False)
    fused = prepare_fused_params(linears, mrelus)
    y = jax.block_until_ready(forward(x, fused))
    y_ref = forward_reference(x, linears, mrelus)
    assert y.shape == (2, 10), y.shape
    assert jnp.allclose(y, y_ref, atol=1e-4, rtol=1e-3), \
        f"mismatch (zero mask): max abs err {jnp.max(jnp.abs(y - y_ref))}"

    # Test 2: random binary mask so the slope/bias branch is exercised too.
    linears2, mrelus2 = init_params(kp2, v=0.5, b=0.1, random_mask=True)
    fused2 = prepare_fused_params(linears2, mrelus2)
    y2 = jax.block_until_ready(forward(x, fused2))
    y2_ref = forward_reference(x, linears2, mrelus2)
    assert y2.shape == (2, 10), y2.shape
    assert jnp.allclose(y2, y2_ref, atol=1e-4, rtol=1e-3), \
        f"mismatch (random mask): max abs err {jnp.max(jnp.abs(y2 - y2_ref))}"

    print("KERNEL_OK")
</pallas_src>

<mosaic_0001>
module attributes {stable_mosaic.version = 11 : i64} {
  func.func @_mlp_kernel(%arg0: i32, %arg1: memref<8x896xf32, #tpu.memory_space<vmem>>, %arg2: memref<896x256xf32, #tpu.memory_space<vmem>>, %arg3: memref<1x256xf32, #tpu.memory_space<vmem>>, %arg4: memref<6x256x256xf32, #tpu.memory_space<vmem>>, %arg5: memref<6x1x256xf32, #tpu.memory_space<vmem>>, %arg6: memref<256x128xf32, #tpu.memory_space<vmem>>, %arg7: memref<1x128xf32, #tpu.memory_space<vmem>>, %arg8: memref<7x1x256xf32, #tpu.memory_space<vmem>>, %arg9: memref<7x1x256xf32, #tpu.memory_space<vmem>>, %arg10: memref<7x1x256xf32, #tpu.memory_space<vmem>>, %arg11: memref<8x128xf32, #tpu.memory_space<vmem>>) attributes {dimension_semantics = [#tpu.dimension_semantics<parallel>], iteration_bounds = array<i64: 1>, scalar_prefetch = 0 : i64, scratch_operands = 0 : i64, tpu.core_type = #tpu.core_type<tc>, window_params = [{transform_indices = @transform_0, window_bounds = array<i64: 8, 896>}, {pipeline_mode = #tpu.pipeline_mode<synchronous>, transform_indices = @transform_1, window_bounds = array<i64: 896, 256>}, {pipeline_mode = #tpu.pipeline_mode<synchronous>, transform_indices = @transform_2, window_bounds = array<i64: 1, 256>}, {pipeline_mode = #tpu.pipeline_mode<synchronous>, transform_indices = @transform_3, window_bounds = array<i64: 6, 256, 256>}, {pipeline_mode = #tpu.pipeline_mode<synchronous>, transform_indices = @transform_4, window_bounds = array<i64: 6, 1, 256>}, {pipeline_mode = #tpu.pipeline_mode<synchronous>, transform_indices = @transform_5, window_bounds = array<i64: 256, 128>}, {pipeline_mode = #tpu.pipeline_mode<synchronous>, transform_indices = @transform_6, window_bounds = array<i64: 1, 128>}, {pipeline_mode = #tpu.pipeline_mode<synchronous>, transform_indices = @transform_7, window_bounds = array<i64: 7, 1, 256>}, {pipeline_mode = #tpu.pipeline_mode<synchronous>, transform_indices = @transform_8, window_bounds = array<i64: 7, 1, 256>}, {pipeline_mode = #tpu.pipeline_mode<synchronous>, transform_indices = @transform_9, window_bounds = array<i64: 7, 1, 256>}, {transform_indices = @transform_10, window_bounds = array<i64: 8, 128>}]} {
    %c0 = arith.constant 0 : index
    %c0_0 = arith.constant 0 : index
    %0 = vector.load %arg1[%c0, %c0_0] : memref<8x896xf32, #tpu.memory_space<vmem>>, vector<8x896xf32>
    %c0_1 = arith.constant 0 : index
    %c0_2 = arith.constant 0 : index
    %1 = vector.load %arg2[%c0_1, %c0_2] : memref<896x256xf32, #tpu.memory_space<vmem>>, vector<896x256xf32>
    %cst = arith.constant dense<0.000000e+00> : vector<8x256xf32>
    %2 = tpu.matmul %0, %1, %cst {dimension_numbers = #tpu.dot_dimension_numbers<[1], [0], [0], [1], [0, 0, 1, 1], [], []>} : vector<8x896xf32>, vector<896x256xf32>, vector<8x256xf32> -> vector<8x256xf32>
    %c0_3 = arith.constant 0 : index
    %c0_4 = arith.constant 0 : index
    %3 = vector.load %arg3[%c0_3, %c0_4] : memref<1x256xf32, #tpu.memory_space<vmem>>, vector<1x256xf32>
    %4 = vector.broadcast %3 : vector<1x256xf32> to vector<8x256xf32>
    %5 = arith.addf %2, %4 : vector<8x256xf32>
    %cst_5 = arith.constant 0.000000e+00 : f32
    %6 = vector.broadcast %cst_5 : f32 to vector<8x256xf32>
    %7 = arith.maximumf %5, %6 : vector<8x256xf32>
    %c0_6 = arith.constant 0 : index
    %c0_7 = arith.constant 0 : index
    %c0_8 = arith.constant 0 : index
    %8 = vector.load %arg8[%c0_6, %c0_7, %c0_8] : memref<7x1x256xf32, #tpu.memory_space<vmem>>, vector<1x1x256xf32>
    %9 = vector.shape_cast %8 : vector<1x1x256xf32> to vector<1x256xf32>
    %10 = vector.broadcast %9 : vector<1x256xf32> to vector<8x256xf32>
    %11 = arith.mulf %7, %10 : vector<8x256xf32>
    %c0_9 = arith.constant 0 : index
    %c0_10 = arith.constant 0 : index
    %c0_11 = arith.constant 0 : index
    %12 = vector.load %arg9[%c0_9, %c0_10, %c0_11] : memref<7x1x256xf32, #tpu.memory_space<vmem>>, vector<1x1x256xf32>
    %13 = vector.shape_cast %12 : vector<1x1x256xf32> to vector<1x256xf32>
    %14 = vector.broadcast %13 : vector<1x256xf32> to vector<8x256xf32>
    %15 = arith.mulf %5, %14 : vector<8x256xf32>
    %16 = arith.addf %11, %15 : vector<8x256xf32>
    %c0_12 = arith.constant 0 : index
    %c0_13 = arith.constant 0 : index
    %c0_14 = arith.constant 0 : index
    %17 = vector.load %arg10[%c0_12, %c0_13, %c0_14] : memref<7x1x256xf32, #tpu.memory_space<vmem>>, vector<1x1x256xf32>
    %18 = vector.shape_cast %17 : vector<1x1x256xf32> to vector<1x256xf32>
    %19 = vector.broadcast %18 : vector<1x256xf32> to vector<8x256xf32>
    %20 = arith.addf %16, %19 : vector<8x256xf32>
    %c0_15 = arith.constant 0 : index
    %c0_16 = arith.constant 0 : index
    %c0_17 = arith.constant 0 : index
    %21 = vector.load %arg4[%c0_15, %c0_16, %c0_17] : memref<6x256x256xf32, #tpu.memory_space<vmem>>, vector<1x256x256xf32>
    %22 = vector.shape_cast %21 : vector<1x256x256xf32> to vector<256x256xf32>
    %cst_18 = arith.constant dense<0.000000e+00> : vector<8x256xf32>
    %23 = tpu.matmul %20, %22, %cst_18 {dimension_numbers = #tpu.dot_dimension_numbers<[1], [0], [0], [1], [0, 0, 1, 1], [], []>} : vector<8x256xf32>, vector<256x256xf32>, vector<8x256xf32> -> vector<8x256xf32>
    %c0_19 = arith.constant 0 : index
    %c0_20 = arith.constant 0 : index
    %c0_21 = arith.constant 0 : index
    %24 = vector.load %arg5[%c0_19, %c0_20, %c0_21] : memref<6x1x256xf32, #tpu.memory_space<vmem>>, vector<1x1x256xf32>
    %25 = vector.shape_cast %24 : vector<1x1x256xf32> to vector<1x256xf32>
    %26 = vector.broadcast %25 : vector<1x256xf32> to vector<8x256xf32>
    %27 = arith.addf %23, %26 : vector<8x256xf32>
    %cst_22 = arith.constant 0.000000e+00 : f32
    %28 = vector.broadcast %cst_22 : f32 to vector<8x256xf32>
    %29 = arith.maximumf %27, %28 : vector<8x256xf32>
    %c1 = arith.constant 1 : index
    %c0_23 = arith.constant 0 : index
    %c0_24 = arith.constant 0 : index
    %30 = vector.load %arg8[%c1, %c0_23, %c0_24] : memref<7x1x256xf32, #tpu.memory_space<vmem>>, vector<1x1x256xf32>
    %31 = vector.shape_cast %30 : vector<1x1x256xf32> to vector<1x256xf32>
    %32 = vector.broadcast %31 : vector<1x256xf32> to vector<8x256xf32>
    %33 = arith.mulf %29, %32 : vector<8x256xf32>
    %c1_25 = arith.constant 1 : index
    %c0_26 = arith.constant 0 : index
    %c0_27 = arith.constant 0 : index
    %34 = vector.load %arg9[%c1_25, %c0_26, %c0_27] : memref<7x1x256xf32, #tpu.memory_space<vmem>>, vector<1x1x256xf32>
    %35 = vector.shape_cast %34 : vector<1x1x256xf32> to vector<1x256xf32>
    %36 = vector.broadcast %35 : vector<1x256xf32> to vector<8x256xf32>
    %37 = arith.mulf %27, %36 : vector<8x256xf32>
    %38 = arith.addf %33, %37 : vector<8x256xf32>
    %c1_28 = arith.constant 1 : index
    %c0_29 = arith.constant 0 : index
    %c0_30 = arith.constant 0 : index
    %39 = vector.load %arg10[%c1_28, %c0_29, %c0_30] : memref<7x1x256xf32, #tpu.memory_space<vmem>>, vector<1x1x256xf32>
    %40 = vector.shape_cast %39 : vector<1x1x256xf32> to vector<1x256xf32>
    %41 = vector.broadcast %40 : vector<1x256xf32> to vector<8x256xf32>
    %42 = arith.addf %38, %41 : vector<8x256xf32>
    %c1_31 = arith.constant 1 : index
    %c0_32 = arith.constant 0 : index
    %c0_33 = arith.constant 0 : index
    %43 = vector.load %arg4[%c1_31, %c0_32, %c0_33] : memref<6x256x256xf32, #tpu.memory_space<vmem>>, vector<1x256x256xf32>
    %44 = vector.shape_cast %43 : vector<1x256x256xf32> to vector<256x256xf32>
    %cst_34 = arith.constant dense<0.000000e+00> : vector<8x256xf32>
    %45 = tpu.matmul %42, %44, %cst_34 {dimension_numbers = #tpu.dot_dimension_numbers<[1], [0], [0], [1], [0, 0, 1, 1], [], []>} : vector<8x256xf32>, vector<256x256xf32>, vector<8x256xf32> -> vector<8x256xf32>
    %c1_35 = arith.constant 1 : index
    %c0_36 = arith.constant 0 : index
    %c0_37 = arith.constant 0 : index
    %46 = vector.load %arg5[%c1_35, %c0_36, %c0_37] : memref<6x1x256xf32, #tpu.memory_space<vmem>>, vector<1x1x256xf32>
    %47 = vector.shape_cast %46 : vector<1x1x256xf32> to vector<1x256xf32>
    %48 = vector.broadcast %47 : vector<1x256xf32> to vector<8x256xf32>
    %49 = arith.addf %45, %48 : vector<8x256xf32>
    %cst_38 = arith.constant 0.000000e+00 : f32
    %50 = vector.broadcast %cst_38 : f32 to vector<8x256xf32>
    %51 = arith.maximumf %49, %50 : vector<8x256xf32>
    %c2 = arith.constant 2 : index
    %c0_39 = arith.constant 0 : index
    %c0_40 = arith.constant 0 : index
    %52 = vector.load %arg8[%c2, %c0_39, %c0_40] : memref<7x1x256xf32, #tpu.memory_space<vmem>>, vector<1x1x256xf32>
    %53 = vector.shape_cast %52 : vector<1x1x256xf32> to vector<1x256xf32>
    %54 = vector.broadcast %53 : vector<1x256xf32> to vector<8x256xf32>
    %55 = arith.mulf %51, %54 : vector<8x256xf32>
    %c2_41 = arith.constant 2 : index
    %c0_42 = arith.constant 0 : index
    %c0_43 = arith.constant 0 : index
    %56 = vector.load %arg9[%c2_41, %c0_42, %c0_43] : memref<7x1x256xf32, #tpu.memory_space<vmem>>, vector<1x1x256xf32>
    %57 = vector.shape_cast %56 : vector<1x1x256xf32> to vector<1x256xf32>
    %58 = vector.broadcast %57 : vector<1x256xf32> to vector<8x256xf32>
    %59 = arith.mulf %49, %58 : vector<8x256xf32>
    %60 = arith.addf %55, %59 : vector<8x256xf32>
    %c2_44 = arith.constant 2 : index
    %c0_45 = arith.constant 0 : index
    %c0_46 = arith.constant 0 : index
    %61 = vector.load %arg10[%c2_44, %c0_45, %c0_46] : memref<7x1x256xf32, #tpu.memory_space<vmem>>, vector<1x1x256xf32>
    %62 = vector.shape_cast %61 : vector<1x1x256xf32> to vector<1x256xf32>
    %63 = vector.broadcast %62 : vector<1x256xf32> to vector<8x256xf32>
    %64 = arith.addf %60, %63 : vector<8x256xf32>
    %c2_47 = arith.constant 2 : index
    %c0_48 = arith.constant 0 : index
    %c0_49 = arith.constant 0 : index
    %65 = vector.load %arg4[%c2_47, %c0_48, %c0_49] : memref<6x256x256xf32, #tpu.memory_space<vmem>>, vector<1x256x256xf32>
    %66 = vector.shape_cast %65 : vector<1x256x256xf32> to vector<256x256xf32>
    %cst_50 = arith.constant dense<0.000000e+00> : vector<8x256xf32>
    %67 = tpu.matmul %64, %66, %cst_50 {dimension_numbers = #tpu.dot_dimension_numbers<[1], [0], [0], [1], [0, 0, 1, 1], [], []>} : vector<8x256xf32>, vector<256x256xf32>, vector<8x256xf32> -> vector<8x256xf32>
    %c2_51 = arith.constant 2 : index
    %c0_52 = arith.constant 0 : index
    %c0_53 = arith.constant 0 : index
    %68 = vector.load %arg5[%c2_51, %c0_52, %c0_53] : memref<6x1x256xf32, #tpu.memory_space<vmem>>, vector<1x1x256xf32>
    %69 = vector.shape_cast %68 : vector<1x1x256xf32> to vector<1x256xf32>
    %70 = vector.broadcast %69 : vector<1x256xf32> to vector<8x256xf32>
    %71 = arith.addf %67, %70 : vector<8x256xf32>
    %cst_54 = arith.constant 0.000000e+00 : f32
    %72 = vector.broadcast %cst_54 : f32 to vector<8x256xf32>
    %73 = arith.maximumf %71, %72 : vector<8x256xf32>
    %c3 = arith.constant 3 : index
    %c0_55 = arith.constant 0 : index
    %c0_56 = arith.constant 0 : index
    %74 = vector.load %arg8[%c3, %c0_55, %c0_56] : memref<7x1x256xf32, #tpu.memory_space<vmem>>, vector<1x1x256xf32>
    %75 = vector.shape_cast %74 : vector<1x1x256xf32> to vector<1x256xf32>
    %76 = vector.broadcast %75 : vector<1x256xf32> to vector<8x256xf32>
    %77 = arith.mulf %73, %76 : vector<8x256xf32>
    %c3_57 = arith.constant 3 : index
    %c0_58 = arith.constant 0 : index
    %c0_59 = arith.constant 0 : index
    %78 = vector.load %arg9[%c3_57, %c0_58, %c0_59] : memref<7x1x256xf32, #tpu.memory_space<vmem>>, vector<1x1x256xf32>
    %79 = vector.shape_cast %78 : vector<1x1x256xf32> to vector<1x256xf32>
    %80 = vector.broadcast %79 : vector<1x256xf32> to vector<8x256xf32>
    %81 = arith.mulf %71, %80 : vector<8x256xf32>
    %82 = arith.addf %77, %81 : vector<8x256xf32>
    %c3_60 = arith.constant 3 : index
    %c0_61 = arith.constant 0 : index
    %c0_62 = arith.constant 0 : index
    %83 = vector.load %arg10[%c3_60, %c0_61, %c0_62] : memref<7x1x256xf32, #tpu.memory_space<vmem>>, vector<1x1x256xf32>
    %84 = vector.shape_cast %83 : vector<1x1x256xf32> to vector<1x256xf32>
    %85 = vector.broadcast %84 : vector<1x256xf32> to vector<8x256xf32>
    %86 = arith.addf %82, %85 : vector<8x256xf32>
    %c3_63 = arith.constant 3 : index
    %c0_64 = arith.constant 0 : index
    %c0_65 = arith.constant 0 : index
    %87 = vector.load %arg4[%c3_63, %c0_64, %c0_65] : memref<6x256x256xf32, #tpu.memory_space<vmem>>, vector<1x256x256xf32>
    %88 = vector.shape_cast %87 : vector<1x256x256xf32> to vector<256x256xf32>
    %cst_66 = arith.constant dense<0.000000e+00> : vector<8x256xf32>
    %89 = tpu.matmul %86, %88, %cst_66 {dimension_numbers = #tpu.dot_dimension_numbers<[1], [0], [0], [1], [0, 0, 1, 1], [], []>} : vector<8x256xf32>, vector<256x256xf32>, vector<8x256xf32> -> vector<8x256xf32>
    %c3_67 = arith.constant 3 : index
    %c0_68 = arith.constant 0 : index
    %c0_69 = arith.constant 0 : index
    %90 = vector.load %arg5[%c3_67, %c0_68, %c0_69] : memref<6x1x256xf32, #tpu.memory_space<vmem>>, vector<1x1x256xf32>
    %91 = vector.shape_cast %90 : vector<1x1x256xf32> to vector<1x256xf32>
    %92 = vector.broadcast %91 : vector<1x256xf32> to vector<8x256xf32>
    %93 = arith.addf %89, %92 : vector<8x256xf32>
    %cst_70 = arith.constant 0.000000e+00 : f32
    %94 = vector.broadcast %cst_70 : f32 to vector<8x256xf32>
    %95 = arith.maximumf %93, %94 : vector<8x256xf32>
    %c4 = arith.constant 4 : index
    %c0_71 = arith.constant 0 : index
    %c0_72 = arith.constant 0 : index
    %96 = vector.load %arg8[%c4, %c0_71, %c0_72] : memref<7x1x256xf32, #tpu.memory_space<vmem>>, vector<1x1x256xf32>
    %97 = vector.shape_cast %96 : vector<1x1x256xf32> to vector<1x256xf32>
    %98 = vector.broadcast %97 : vector<1x256xf32> to vector<8x256xf32>
    %99 = arith.mulf %95, %98 : vector<8x256xf32>
    %c4_73 = arith.constant 4 : index
    %c0_74 = arith.constant 0 : index
    %c0_75 = arith.constant 0 : index
    %100 = vector.load %arg9[%c4_73, %c0_74, %c0_75] : memref<7x1x256xf32, #tpu.memory_space<vmem>>, vector<1x1x256xf32>
    %101 = vector.shape_cast %100 : vector<1x1x256xf32> to vector<1x256xf32>
    %102 = vector.broadcast %101 : vector<1x256xf32> to vector<8x256xf32>
    %103 = arith.mulf %93, %102 : vector<8x256xf32>
    %104 = arith.addf %99, %103 : vector<8x256xf32>
    %c4_76 = arith.constant 4 : index
    %c0_77 = arith.constant 0 : index
    %c0_78 = arith.constant 0 : index
    %105 = vector.load %arg10[%c4_76, %c0_77, %c0_78] : memref<7x1x256xf32, #tpu.memory_space<vmem>>, vector<1x1x256xf32>
    %106 = vector.shape_cast %105 : vector<1x1x256xf32> to vector<1x256xf32>
    %107 = vector.broadcast %106 : vector<1x256xf32> to vector<8x256xf32>
    %108 = arith.addf %104, %107 : vector<8x256xf32>
    %c4_79 = arith.constant 4 : index
    %c0_80 = arith.constant 0 : index
    %c0_81 = arith.constant 0 : index
    %109 = vector.load %arg4[%c4_79, %c0_80, %c0_81] : memref<6x256x256xf32, #tpu.memory_space<vmem>>, vector<1x256x256xf32>
    %110 = vector.shape_cast %109 : vector<1x256x256xf32> to vector<256x256xf32>
    %cst_82 = arith.constant dense<0.000000e+00> : vector<8x256xf32>
    %111 = tpu.matmul %108, %110, %cst_82 {dimension_numbers = #tpu.dot_dimension_numbers<[1], [0], [0], [1], [0, 0, 1, 1], [], []>} : vector<8x256xf32>, vector<256x256xf32>, vector<8x256xf32> -> vector<8x256xf32>
    %c4_83 = arith.constant 4 : index
    %c0_84 = arith.constant 0 : index
    %c0_85 = arith.constant 0 : index
    %112 = vector.load %arg5[%c4_83, %c0_84, %c0_85] : memref<6x1x256xf32, #tpu.memory_space<vmem>>, vector<1x1x256xf32>
    %113 = vector.shape_cast %112 : vector<1x1x256xf32> to vector<1x256xf32>
    %114 = vector.broadcast %113 : vector<1x256xf32> to vector<8x256xf32>
    %115 = arith.addf %111, %114 : vector<8x256xf32>
    %cst_86 = arith.constant 0.000000e+00 : f32
    %116 = vector.broadcast %cst_86 : f32 to vector<8x256xf32>
    %117 = arith.maximumf %115, %116 : vector<8x256xf32>
    %c5 = arith.constant 5 : index
    %c0_87 = arith.constant 0 : index
    %c0_88 = arith.constant 0 : index
    %118 = vector.load %arg8[%c5, %c0_87, %c0_88] : memref<7x1x256xf32, #tpu.memory_space<vmem>>, vector<1x1x256xf32>
    %119 = vector.shape_cast %118 : vector<1x1x256xf32> to vector<1x256xf32>
    %120 = vector.broadcast %119 : vector<1x256xf32> to vector<8x256xf32>
    %121 = arith.mulf %117, %120 : vector<8x256xf32>
    %c5_89 = arith.constant 5 : index
    %c0_90 = arith.constant 0 : index
    %c0_91 = arith.constant 0 : index
    %122 = vector.load %arg9[%c5_89, %c0_90, %c0_91] : memref<7x1x256xf32, #tpu.memory_space<vmem>>, vector<1x1x256xf32>
    %123 = vector.shape_cast %122 : vector<1x1x256xf32> to vector<1x256xf32>
    %124 = vector.broadcast %123 : vector<1x256xf32> to vector<8x256xf32>
    %125 = arith.mulf %115, %124 : vector<8x256xf32>
    %126 = arith.addf %121, %125 : vector<8x256xf32>
    %c5_92 = arith.constant 5 : index
    %c0_93 = arith.constant 0 : index
    %c0_94 = arith.constant 0 : index
    %127 = vector.load %arg10[%c5_92, %c0_93, %c0_94] : memref<7x1x256xf32, #tpu.memory_space<vmem>>, vector<1x1x256xf32>
    %128 = vector.shape_cast %127 : vector<1x1x256xf32> to vector<1x256xf32>
    %129 = vector.broadcast %128 : vector<1x256xf32> to vector<8x256xf32>
    %130 = arith.addf %126, %129 : vector<8x256xf32>
    %c5_95 = arith.constant 5 : index
    %c0_96 = arith.constant 0 : index
    %c0_97 = arith.constant 0 : index
    %131 = vector.load %arg4[%c5_95, %c0_96, %c0_97] : memref<6x256x256xf32, #tpu.memory_space<vmem>>, vector<1x256x256xf32>
    %132 = vector.shape_cast %131 : vector<1x256x256xf32> to vector<256x256xf32>
    %cst_98 = arith.constant dense<0.000000e+00> : vector<8x256xf32>
    %133 = tpu.matmul %130, %132, %cst_98 {dimension_numbers = #tpu.dot_dimension_numbers<[1], [0], [0], [1], [0, 0, 1, 1], [], []>} : vector<8x256xf32>, vector<256x256xf32>, vector<8x256xf32> -> vector<8x256xf32>
    %c5_99 = arith.constant 5 : index
    %c0_100 = arith.constant 0 : index
    %c0_101 = arith.constant 0 : index
    %134 = vector.load %arg5[%c5_99, %c0_100, %c0_101] : memref<6x1x256xf32, #tpu.memory_space<vmem>>, vector<1x1x256xf32>
    %135 = vector.shape_cast %134 : vector<1x1x256xf32> to vector<1x256xf32>
    %136 = vector.broadcast %135 : vector<1x256xf32> to vector<8x256xf32>
    %137 = arith.addf %133, %136 : vector<8x256xf32>
    %cst_102 = arith.constant 0.000000e+00 : f32
    %138 = vector.broadcast %cst_102 : f32 to vector<8x256xf32>
    %139 = arith.maximumf %137, %138 : vector<8x256xf32>
    %c6 = arith.constant 6 : index
    %c0_103 = arith.constant 0 : index
    %c0_104 = arith.constant 0 : index
    %140 = vector.load %arg8[%c6, %c0_103, %c0_104] : memref<7x1x256xf32, #tpu.memory_space<vmem>>, vector<1x1x256xf32>
    %141 = vector.shape_cast %140 : vector<1x1x256xf32> to vector<1x256xf32>
    %142 = vector.broadcast %141 : vector<1x256xf32> to vector<8x256xf32>
    %143 = arith.mulf %139, %142 : vector<8x256xf32>
    %c6_105 = arith.constant 6 : index
    %c0_106 = arith.constant 0 : index
    %c0_107 = arith.constant 0 : index
    %144 = vector.load %arg9[%c6_105, %c0_106, %c0_107] : memref<7x1x256xf32, #tpu.memory_space<vmem>>, vector<1x1x256xf32>
    %145 = vector.shape_cast %144 : vector<1x1x256xf32> to vector<1x256xf32>
    %146 = vector.broadcast %145 : vector<1x256xf32> to vector<8x256xf32>
    %147 = arith.mulf %137, %146 : vector<8x256xf32>
    %148 = arith.addf %143, %147 : vector<8x256xf32>
    %c6_108 = arith.constant 6 : index
    %c0_109 = arith.constant 0 : index
    %c0_110 = arith.constant 0 : index
    %149 = vector.load %arg10[%c6_108, %c0_109, %c0_110] : memref<7x1x256xf32, #tpu.memory_space<vmem>>, vector<1x1x256xf32>
    %150 = vector.shape_cast %149 : vector<1x1x256xf32> to vector<1x256xf32>
    %151 = vector.broadcast %150 : vector<1x256xf32> to vector<8x256xf32>
    %152 = arith.addf %148, %151 : vector<8x256xf32>
    %c0_111 = arith.constant 0 : index
    %c0_112 = arith.constant 0 : index
    %153 = vector.load %arg6[%c0_111, %c0_112] : memref<256x128xf32, #tpu.memory_space<vmem>>, vector<256x128xf32>
    %cst_113 = arith.constant dense<0.000000e+00> : vector<8x128xf32>
    %154 = tpu.matmul %152, %153, %cst_113 {dimension_numbers = #tpu.dot_dimension_numbers<[1], [0], [0], [1], [0, 0, 1, 1], [], []>} : vector<8x256xf32>, vector<256x128xf32>, vector<8x128xf32> -> vector<8x128xf32>
    %c0_114 = arith.constant 0 : index
    %c0_115 = arith.constant 0 : index
    %155 = vector.load %arg7[%c0_114, %c0_115] : memref<1x128xf32, #tpu.memory_space<vmem>>, vector<1x128xf32>
    %156 = vector.broadcast %155 : vector<1x128xf32> to vector<8x128xf32>
    %157 = arith.addf %154, %156 : vector<8x128xf32>
    %c0_116 = arith.constant 0 : index
    %c0_117 = arith.constant 0 : index
    %158 = vector.load %arg11[%c0_116, %c0_117] : memref<8x128xf32, #tpu.memory_space<vmem>>, vector<8x128xf32>
    tpu.vector_store %arg11[%c0_116, %c0_117], %157 {strides = array<i32>} : memref<8x128xf32, #tpu.memory_space<vmem>>, vector<8x128xf32>,
    return
  }
  func.func @transform_0(%arg0: i32) -> (i32, i32) {
    %c0_i32 = arith.constant 0 : i32
    %c0_i32_0 = arith.constant 0 : i32
    return %arg0, %c0_i32 : i32, i32
  }
  func.func @transform_1(%arg0: i32) -> (i32, i32) {
    %c0_i32 = arith.constant 0 : i32
    %c0_i32_0 = arith.constant 0 : i32
    %c0_i32_1 = arith.constant 0 : i32
    return %c0_i32, %c0_i32_0 : i32, i32
  }
  func.func @transform_2(%arg0: i32) -> (i32, i32) {
    %c0_i32 = arith.constant 0 : i32
    %c0_i32_0 = arith.constant 0 : i32
    %c0_i32_1 = arith.constant 0 : i32
    return %c0_i32, %c0_i32_0 : i32, i32
  }
  func.func @transform_3(%arg0: i32) -> (i32, i32, i32) {
    %c0_i32 = arith.constant 0 : i32
    %c0_i32_0 = arith.constant 0 : i32
    %c0_i32_1 = arith.constant 0 : i32
    %c0_i32_2 = arith.constant 0 : i32
    return %c0_i32, %c0_i32_0, %c0_i32_1 : i32, i32, i32
  }
  func.func @transform_4(%arg0: i32) -> (i32, i32, i32) {
    %c0_i32 = arith.constant 0 : i32
    %c0_i32_0 = arith.constant 0 : i32
    %c0_i32_1 = arith.constant 0 : i32
    %c0_i32_2 = arith.constant 0 : i32
    return %c0_i32, %c0_i32_0, %c0_i32_1 : i32, i32, i32
  }
  func.func @transform_5(%arg0: i32) -> (i32, i32) {
    %c0_i32 = arith.constant 0 : i32
    %c0_i32_0 = arith.constant 0 : i32
    %c0_i32_1 = arith.constant 0 : i32
    return %c0_i32, %c0_i32_0 : i32, i32
  }
  func.func @transform_6(%arg0: i32) -> (i32, i32) {
    %c0_i32 = arith.constant 0 : i32
    %c0_i32_0 = arith.constant 0 : i32
    %c0_i32_1 = arith.constant 0 : i32
    return %c0_i32, %c0_i32_0 : i32, i32
  }
  func.func @transform_7(%arg0: i32) -> (i32, i32, i32) {
    %c0_i32 = arith.constant 0 : i32
    %c0_i32_0 = arith.constant 0 : i32
    %c0_i32_1 = arith.constant 0 : i32
    %c0_i32_2 = arith.constant 0 : i32
    return %c0_i32, %c0_i32_0, %c0_i32_1 : i32, i32, i32
  }
  func.func @transform_8(%arg0: i32) -> (i32, i32, i32) {
    %c0_i32 = arith.constant 0 : i32
    %c0_i32_0 = arith.constant 0 : i32
    %c0_i32_1 = arith.constant 0 : i32
    %c0_i32_2 = arith.constant 0 : i32
    return %c0_i32, %c0_i32_0, %c0_i32_1 : i32, i32, i32
  }
  func.func @transform_9(%arg0: i32) -> (i32, i32, i32) {
    %c0_i32 = arith.constant 0 : i32
    %c0_i32_0 = arith.constant 0 : i32
    %c0_i32_1 = arith.constant 0 : i32
    %c0_i32_2 = arith.constant 0 : i32
    return %c0_i32, %c0_i32_0, %c0_i32_1 : i32, i32, i32
  }
  func.func @transform_10(%arg0: i32) -> (i32, i32) {
    %c0_i32 = arith.constant 0 : i32
    %c0_i32_0 = arith.constant 0 : i32
    return %arg0, %c0_i32 : i32, i32
  }
}

</mosaic_0001>

<llo_original>
// kernel: forward.1
$region0: #{forward.1}
  #allocation0 [shape = 'u32[]', space=smem, size = 0x4, offset = 0x4, fixed_abs, tag = 'smem constant byte address 0x4 - core index']
  #allocation1 [shape = 'u32[72,128]{1,0:T(1,128)}', space=vmem, size = 0x9000, scoped, tag = 'internal scratch']
  %s0 = inlined_call_operand.vmem [shape: f32[8,896], index: 0, kind: input, shape index: {}]
  %s1 = inlined_call_operand.hbm [shape: f32[896,256], index: 1, kind: input, shape index: {}]
  %s2 = inlined_call_operand.hbm [shape: f32[1,256], index: 2, kind: input, shape index: {}]
  %s3 = inlined_call_operand.hbm [shape: f32[6,256,256], index: 3, kind: input, shape index: {}]
  %s4 = inlined_call_operand.hbm [shape: f32[6,1,256], index: 4, kind: input, shape index: {}]
  %s5 = inlined_call_operand.hbm [shape: f32[256,128], index: 5, kind: input, shape index: {}]
  %s6 = inlined_call_operand.hbm [shape: f32[1,128], index: 6, kind: input, shape index: {}]
  %s7 = inlined_call_operand.hbm [shape: f32[7,1,256], index: 7, kind: input, shape index: {}]
  %s8 = inlined_call_operand.hbm [shape: f32[7,1,256], index: 8, kind: input, shape index: {}]
  %s9 = inlined_call_operand.hbm [shape: f32[7,1,256], index: 9, kind: input, shape index: {}]
  %s10 = inlined_call_operand.vmem [shape: f32[8,128], index: 10, kind: output, shape index: {}]
  %s11 = sld [smem:[#allocation0]]
  $region86: #{forward.1} parent=0
    _
  %s13 = ssub.s32 1, %s11
  %s14 = scalar_select 0, %s13, %s11
  $region1: #{forward.1} parent=0
    #allocation2 [shape = 'u8[917504]{0}', space=vmem, size = 0xe0000, scoped, tag = 'input window, operand 1, single buffered']
    #allocation3 [shape = 's32[1]{0}', space=sflag, size = 0x4, scoped, tag = 'scoped memory for forward.1']
    #allocation4 [shape = 'u8[1024]{0}', space=vmem, size = 0x400, scoped, tag = 'input window, operand 2, single buffered']
    #allocation5 [shape = 's32[1]{0}', space=sflag, size = 0x4, scoped, tag = 'scoped memory for forward.1']
    #allocation6 [shape = 'u8[1572864]{0}', space=vmem, size = 0x180000, scoped, tag = 'input window, operand 3, single buffered']
    #allocation7 [shape = 'u8[6144]{0}', space=vmem, size = 0x1800, scoped, tag = 'input window, operand 4, single buffered']
    #allocation8 [shape = 's32[1]{0}', space=sflag, size = 0x4, scoped, tag = 'scoped memory for forward.1']
    #allocation9 [shape = 'u8[131072]{0}', space=vmem, size = 0x20000, scoped, tag = 'input window, operand 5, single buffered']
    #allocation10 [shape = 'u8[512]{0}', space=vmem, size = 0x400, scoped, tag = 'input window, operand 6, single buffered']
    #allocation11 [shape = 's32[1]{0}', space=sflag, size = 0x4, scoped, tag = 'scoped memory for forward.1']
    #allocation12 [shape = 'u8[7168]{0}', space=vmem, size = 0x1c00, scoped, tag = 'input window, operand 7, single buffered']
    #allocation13 [shape = 'u8[7168]{0}', space=vmem, size = 0x1c00, scoped, tag = 'input window, operand 8, single buffered']
    #allocation14 [shape = 's32[1]{0}', space=sflag, size = 0x4, scoped, tag = 'scoped memory for forward.1']
    #allocation15 [shape = 'u8[7168]{0}', space=vmem, size = 0x1c00, scoped, tag = 'input window, operand 9, single buffered']
    %15 = vsyncpa [#allocation3], 0
    %16 = vsyncpa [#allocation5], 0
    %17 = vsyncpa [#allocation8], 0
    %18 = vsyncpa [#allocation11], 0
    %19 = vsyncpa [#allocation14], 0
    // Predicated region
    $region2: #{forward.1} parent=1 // pred_check
      _
    $region3: #{forward.1} parent=1 // pred_check_branch
      %21 = sbr.rel (0) target = $region5
    $region4: #{forward.1} parent=1 // pred_region
      _
    $region5: #{forward.1} parent=1 // pred_fallthru
      _
    // Predicated region
    $region6: #{forward.1} parent=1 // pred_check
      _
    $region7: #{forward.1} parent=1 // pred_check_branch
      %23 = sbr.rel (0) target = $region9
    $region8: #{forward.1} parent=1 // pred_region
      %25 = vsyncadd [#allocation3], 0
      %s26 = sshll.u32 %s1, 4
      %s27 = int_to_ptr.hbm [resolvable:$true] %s26
      %s28 = sshll.u32 [#allocation2], 4
      %s29 = int_to_ptr.vmem [resolvable:$true] %s28
      %34 = dma.hbm_to_vmem [thread:$0]  %s27, 28672, %s29, [#allocation3], 256, 256, 16
    $region9: #{forward.1} parent=1 // pred_fallthru
      _
    // Predicated region
    $region10: #{forward.1} parent=1 // pred_check
      _
    $region11: #{forward.1} parent=1 // pred_check_branch
      %36 = sbr.rel (0) target = $region13
    $region12: #{forward.1} parent=1 // pred_region
      %38 = vsyncadd [#allocation5], 0
      %s40 = sshll.u32 %s2, 4
      %s41 = int_to_ptr.hbm [resolvable:$true] %s40
      %s42 = sshll.u32 [#allocation4], 4
      %s43 = int_to_ptr.vmem [resolvable:$true] %s42
      %45 = dma.hbm_to_vmem [thread:$0]  %s41, 32, %s43, [#allocation5]
    $region13: #{forward.1} parent=1 // pred_fallthru
      _
    // Predicated region
    $region14: #{forward.1} parent=1 // pred_check
      _
    $region15: #{forward.1} parent=1 // pred_check_branch
      %47 = sbr.rel (0) target = $region17
    $region16: #{forward.1} parent=1 // pred_region
      %49 = vsyncadd [#allocation5], 0
      %s50 = sshll.u32 %s3, 4
      %s51 = int_to_ptr.hbm [resolvable:$true] %s50
      %s52 = sshll.u32 [#allocation6], 4
      %s53 = int_to_ptr.vmem [resolvable:$true] %s52
      %58 = dma.hbm_to_vmem [thread:$0]  %s51, 49152, %s53, [#allocation5], 256, 256, 16
    $region17: #{forward.1} parent=1 // pred_fallthru
      _
    // Predicated region
    $region18: #{forward.1} parent=1 // pred_check
      _
    $region19: #{forward.1} parent=1 // pred_check_branch
      %60 = sbr.rel (0) target = $region21
    $region20: #{forward.1} parent=1 // pred_region
      %62 = vsyncadd [#allocation8], 0
      %s63 = sshll.u32 %s4, 4
      %s64 = int_to_ptr.hbm [resolvable:$true] %s63
      %s65 = sshll.u32 [#allocation7], 4
      %s66 = int_to_ptr.vmem [resolvable:$true] %s65
      %71 = dma.hbm_to_vmem [thread:$0]  %s64, 192, %s66, [#allocation8], 32, 32, 2
    $region21: #{forward.1} parent=1 // pred_fallthru
      _
    // Predicated region
    $region22: #{forward.1} parent=1 // pred_check
      _
    $region23: #{forward.1} parent=1 // pred_check_branch
      %73 = sbr.rel (0) target = $region25
    $region24: #{forward.1} parent=1 // pred_region
      %75 = vsyncadd [#allocation8], 0
      %s76 = sshll.u32 %s5, 4
      %s77 = int_to_ptr.hbm [resolvable:$true] %s76
      %s78 = sshll.u32 [#allocation9], 4
      %s79 = int_to_ptr.vmem [resolvable:$true] %s78
      %84 = dma.hbm_to_vmem [thread:$0]  %s77, 4096, %s79, [#allocation8], 128, 128, 8
    $region25: #{forward.1} parent=1 // pred_fallthru
      _
    // Predicated region
    $region26: #{forward.1} parent=1 // pred_check
      _
    $region27: #{forward.1} parent=1 // pred_check_branch
      %86 = sbr.rel (0) target = $region29
    $region28: #{forward.1} parent=1 // pred_region
      %88 = vsyncadd [#allocation11], 0
      %s90 = sshll.u32 %s6, 4
      %s91 = int_to_ptr.hbm [resolvable:$true] %s90
      %s92 = sshll.u32 [#allocation10], 4
      %s93 = int_to_ptr.vmem [resolvable:$true] %s92
      %95 = dma.hbm_to_vmem [thread:$0]  %s91, 16, %s93, [#allocation11]
    $region29: #{forward.1} parent=1 // pred_fallthru
      _
    // Predicated region
    $region30: #{forward.1} parent=1 // pred_check
      _
    $region31: #{forward.1} parent=1 // pred_check_branch
      %97 = sbr.rel (0) target = $region33
    $region32: #{forward.1} parent=1 // pred_region
      %99 = vsyncadd [#allocation11], 0
      %s100 = sshll.u32 %s7, 4
      %s101 = int_to_ptr.hbm [resolvable:$true] %s100
      %s102 = sshll.u32 [#allocation12], 4
      %s103 = int_to_ptr.vmem [resolvable:$true] %s102
      %108 = dma.hbm_to_vmem [thread:$0]  %s101, 224, %s103, [#allocation11], 32, 32, 2
    $region33: #{forward.1} parent=1 // pred_fallthru
      _
    // Predicated region
    $region34: #{forward.1} parent=1 // pred_check
      _
    $region35: #{forward.1} parent=1 // pred_check_branch
      %110 = sbr.rel (0) target = $region37
    $region36: #{forward.1} parent=1 // pred_region
      %112 = vsyncadd [#allocation14], 0
      %s113 = sshll.u32 %s8, 4
      %s114 = int_to_ptr.hbm [resolvable:$true] %s113
      %s115 = sshll.u32 [#allocation13], 4
      %s116 = int_to_ptr.vmem [resolvable:$true] %s115
      %121 = dma.hbm_to_vmem [thread:$0]  %s114, 224, %s116, [#allocation14], 32, 32, 2
    $region37: #{forward.1} parent=1 // pred_fallthru
      _
    // Predicated region
    $region38: #{forward.1} parent=1 // pred_check
      _
    $region39: #{forward.1} parent=1 // pred_check_branch
      %123 = sbr.rel (0) target = $region41
    $region40: #{forward.1} parent=1 // pred_region
      %125 = vsyncadd [#allocation14], 0
      %s126 = sshll.u32 %s9, 4
      %s127 = int_to_ptr.hbm [resolvable:$true] %s126
      %s128 = sshll.u32 [#allocation15], 4
      %s129 = int_to_ptr.vmem [resolvable:$true] %s128
      %134 = dma.hbm_to_vmem [thread:$0]  %s127, 224, %s129, [#allocation14], 32, 32, 2
    $region41: #{forward.1} parent=1 // pred_fallthru
      _
    // Predicated region
    $region42: #{forward.1} parent=1 // pred_check
      _
    $region43: #{forward.1} parent=1 // pred_check_branch
      %136 = sbr.rel (0) target = $region45
    $region44: #{forward.1} parent=1 // pred_region
      %138 = dma.done [#allocation3], 28672
    $region45: #{forward.1} parent=1 // pred_fallthru
      _
    // Predicated region
    $region46: #{forward.1} parent=1 // pred_check
      _
    $region47: #{forward.1} parent=1 // pred_check_branch
      %140 = sbr.rel (0) target = $region49
    $region48: #{forward.1} parent=1 // pred_region
      %142 = dma.done [#allocation5], 32
    $region49: #{forward.1} parent=1 // pred_fallthru
      _
    // Predicated region
    $region50: #{forward.1} parent=1 // pred_check
      _
    $region51: #{forward.1} parent=1 // pred_check_branch
      %144 = sbr.rel (0) target = $region53
    $region52: #{forward.1} parent=1 // pred_region
      %146 = dma.done [#allocation5], 49152
    $region53: #{forward.1} parent=1 // pred_fallthru
      _
    // Predicated region
    $region54: #{forward.1} parent=1 // pred_check
      _
    $region55: #{forward.1} parent=1 // pred_check_branch
      %148 = sbr.rel (0) target = $region57
    $region56: #{forward.1} parent=1 // pred_region
      %150 = dma.done [#allocation8], 192
    $region57: #{forward.1} parent=1 // pred_fallthru
      _
    // Predicated region
    $region58: #{forward.1} parent=1 // pred_check
      _
    $region59: #{forward.1} parent=1 // pred_check_branch
      %152 = sbr.rel (0) target = $region61
    $region60: #{forward.1} parent=1 // pred_region
      %154 = dma.done [#allocation8], 4096
    $region61: #{forward.1} parent=1 // pred_fallthru
      _
    // Predicated region
    $region62: #{forward.1} parent=1 // pred_check
      _
    $region63: #{forward.1} parent=1 // pred_check_branch
      %156 = sbr.rel (0) target = $region65
    $region64: #{forward.1} parent=1 // pred_region
      %158 = dma.done [#allocation11], 16
    $region65: #{forward.1} parent=1 // pred_fallthru
      _
    // Predicated region
    $region66: #{forward.1} parent=1 // pred_check
      _
    $region67: #{forward.1} parent=1 // pred_check_branch
      %160 = sbr.rel (0) target = $region69
    $region68: #{forward.1} parent=1 // pred_region
      %162 = dma.done [#allocation11], 224
    $region69: #{forward.1} parent=1 // pred_fallthru
      _
    // Predicated region
    $region70: #{forward.1} parent=1 // pred_check
      _
    $region71: #{forward.1} parent=1 // pred_check_branch
      %164 = sbr.rel (0) target = $region73
    $region72: #{forward.1} parent=1 // pred_region
      %166 = dma.done [#allocation14], 224
    $region73: #{forward.1} parent=1 // pred_fallthru
      _
    // Predicated region
    $region74: #{forward.1} parent=1 // pred_check
      _
    $region75: #{forward.1} parent=1 // pred_check_branch
      %168 = sbr.rel (0) target = $region77
    $region76: #{forward.1} parent=1 // pred_region
      %170 = dma.done [#allocation14], 224
    $region77: #{forward.1} parent=1 // pred_fallthru
      _
    %v171 = vld [vmem:[%s0] sm:$0xff]
    %v172 = vld [vmem:[%s0 + $0x8] sm:$0xff]
    %v173 = vld [vmem:[%s0 + $0x10] sm:$0xff]
    %v174 = vld [vmem:[%s0 + $0x18] sm:$0xff]
    %v175 = vld [vmem:[%s0 + $0x20] sm:$0xff]
    %v176 = vld [vmem:[%s0 + $0x28] sm:$0xff]
    %v177 = vld [vmem:[%s0 + $0x30] sm:$0xff]
    %v178 = vld [vmem:[#allocation2] sm:$0xff]
    %v179 = vld [vmem:[#allocation2 + $0x8] sm:$0xff]
    %v180 = vld [vmem:[#allocation2 + $0x10] sm:$0xff]
    %v181 = vld [vmem:[#allocation2 + $0x18] sm:$0xff]
    %v182 = vld [vmem:[#allocation2 + $0x20] sm:$0xff]
    %v183 = vld [vmem:[#allocation2 + $0x28] sm:$0xff]
    %v184 = vld [vmem:[#allocation2 + $0x30] sm:$0xff]
    %v185 = vld [vmem:[#allocation2 + $0x38] sm:$0xff]
    %v186 = vld [vmem:[#allocation2 + $0x40] sm:$0xff]
    %v187 = vld [vmem:[#allocation2 + $0x48] sm:$0xff]
    %v188 = vld [vmem:[#allocation2 + $0x50] sm:$0xff]
    %v189 = vld [vmem:[#allocation2 + $0x58] sm:$0xff]
    %v190 = vld [vmem:[#allocation2 + $0x60] sm:$0xff]
    %v191 = vld [vmem:[#allocation2 + $0x68] sm:$0xff]
    %v192 = vld [vmem:[#allocation2 + $0x70] sm:$0xff]
    %v193 = vld [vmem:[#allocation2 + $0x78] sm:$0xff]
    %v194 = vld [vmem:[#allocation2 + $0x80] sm:$0xff]
    %v195 = vld [vmem:[#allocation2 + $0x88] sm:$0xff]
    %v196 = vld [vmem:[#allocation2 + $0x90] sm:$0xff]
    %v197 = vld [vmem:[#allocation2 + $0x98] sm:$0xff]
    %v198 = vld [vmem:[#allocation2 + $0xa0] sm:$0xff]
    %v199 = vld [vmem:[#allocation2 + $0xa8] sm:$0xff]
    %v200 = vld [vmem:[#allocation2 + $0xb0] sm:$0xff]
    %v201 = vld [vmem:[#allocation2 + $0xb8] sm:$0xff]
    %v202 = vld [vmem:[#allocation2 + $0xc0] sm:$0xff]
    %v203 = vld [vmem:[#allocation2 + $0xc8] sm:$0xff]
    %v204 = vld [vmem:[#allocation2 + $0xd0] sm:$0xff]
    %v205 = vld [vmem:[#allocation2 + $0xd8] sm:$0xff]
    %v206 = vld [vmem:[#allocation2 + $0xe0] sm:$0xff]
    %v207 = vld [vmem:[#allocation2 + $0xe8] sm:$0xff]
    %v208 = vld [vmem:[#allocation2 + $0xf0] sm:$0xff]
    %v209 = vld [vmem:[#allocation2 + $0xf8] sm:$0xff]
    %v210 = vld [vmem:[#allocation2 + $0x100] sm:$0xff]
    %v211 = vld [vmem:[#allocation2 + $0x108] sm:$0xff]
    %v212 = vld [vmem:[#allocation2 + $0x110] sm:$0xff]
    %v213 = vld [vmem:[#allocation2 + $0x118] sm:$0xff]
    %v214 = vld [vmem:[#allocation2 + $0x120] sm:$0xff]
    %v215 = vld [vmem:[#allocation2 + $0x128] sm:$0xff]
    %v216 = vld [vmem:[#allocation2 + $0x130] sm:$0xff]
    %v217 = vld [vmem:[#allocation2 + $0x138] sm:$0xff]
    %v218 = vld [vmem:[#allocation2 + $0x140] sm:$0xff]
    %v219 = vld [vmem:[#allocation2 + $0x148] sm:$0xff]
    %v220 = vld [vmem:[#allocation2 + $0x150] sm:$0xff]
    %v221 = vld [vmem:[#allocation2 + $0x158] sm:$0xff]
    %v222 = vld [vmem:[#allocation2 + $0x160] sm:$0xff]
    %v223 = vld [vmem:[#allocation2 + $0x168] sm:$0xff]
    %v224 = vld [vmem:[#allocation2 + $0x170] sm:$0xff]
    %v225 = vld [vmem:[#allocation2 + $0x178] sm:$0xff]
    %v226 = vld [vmem:[#allocation2 + $0x180] sm:$0xff]
    %v227 = vld [vmem:[#allocation2 + $0x188] sm:$0xff]
    %v228 = vld [vmem:[#allocation2 + $0x190] sm:$0xff]
    %v229 = vld [vmem:[#allocation2 + $0x198] sm:$0xff]
    %v230 = vld [vmem:[#allocation2 + $0x1a0] sm:$0xff]
    %v231 = vld [vmem:[#allocation2 + $0x1a8] sm:$0xff]
    %v232 = vld [vmem:[#allocation2 + $0x1b0] sm:$0xff]
    %v233 = vld [vmem:[#allocation2 + $0x1b8] sm:$0xff]
    %v234 = vld [vmem:[#allocation2 + $0x1c0] sm:$0xff]
    %v235 = vld [vmem:[#allocation2 + $0x1c8] sm:$0xff]
    %v236 = vld [vmem:[#allocation2 + $0x1d0] sm:$0xff]
    %v237 = vld [vmem:[#allocation2 + $0x1d8] sm:$0xff]
    %v238 = vld [vmem:[#allocation2 + $0x1e0] sm:$0xff]
    %v239 = vld [vmem:[#allocation2 + $0x1e8] sm:$0xff]
    %v240 = vld [vmem:[#allocation2 + $0x1f0] sm:$0xff]
    %v241 = vld [vmem:[#allocation2 + $0x1f8] sm:$0xff]
    %v242 = vld [vmem:[#allocation2 + $0x200] sm:$0xff]
    %v243 = vld [vmem:[#allocation2 + $0x208] sm:$0xff]
    %v244 = vld [vmem:[#allocation2 + $0x210] sm:$0xff]
    %v245 = vld [vmem:[#allocation2 + $0x218] sm:$0xff]
    %v246 = vld [vmem:[#allocation2 + $0x220] sm:$0xff]
    %v247 = vld [vmem:[#allocation2 + $0x228] sm:$0xff]
    %v248 = vld [vmem:[#allocation2 + $0x230] sm:$0xff]
    %v249 = vld [vmem:[#allocation2 + $0x238] sm:$0xff]
    %v250 = vld [vmem:[#allocation2 + $0x240] sm:$0xff]
    %v251 = vld [vmem:[#allocation2 + $0x248] sm:$0xff]
    %v252 = vld [vmem:[#allocation2 + $0x250] sm:$0xff]
    %v253 = vld [vmem:[#allocation2 + $0x258] sm:$0xff]
    %v254 = vld [vmem:[#allocation2 + $0x260] sm:$0xff]
    %v255 = vld [vmem:[#allocation2 + $0x268] sm:$0xff]
    %v256 = vld [vmem:[#allocation2 + $0x270] sm:$0xff]
    %v257 = vld [vmem:[#allocation2 + $0x278] sm:$0xff]
    %v258 = vld [vmem:[#allocation2 + $0x280] sm:$0xff]
    %v259 = vld [vmem:[#allocation2 + $0x288] sm:$0xff]
    %v260 = vld [vmem:[#allocation2 + $0x290] sm:$0xff]
    %v261 = vld [vmem:[#allocation2 + $0x298] sm:$0xff]
    %v262 = vld [vmem:[#allocation2 + $0x2a0] sm:$0xff]
    %v263 = vld [vmem:[#allocation2 + $0x2a8] sm:$0xff]
    %v264 = vld [vmem:[#allocation2 + $0x2b0] sm:$0xff]
    %v265 = vld [vmem:[#allocation2 + $0x2b8] sm:$0xff]
    %v266 = vld [vmem:[#allocation2 + $0x2c0] sm:$0xff]
    %v267 = vld [vmem:[#allocation2 + $0x2c8] sm:$0xff]
    %v268 = vld [vmem:[#allocation2 + $0x2d0] sm:$0xff]
    %v269 = vld [vmem:[#allocation2 + $0x2d8] sm:$0xff]
    %v270 = vld [vmem:[#allocation2 + $0x2e0] sm:$0xff]
    %v271 = vld [vmem:[#allocation2 + $0x2e8] sm:$0xff]
    %v272 = vld [vmem:[#allocation2 + $0x2f0] sm:$0xff]
    %v273 = vld [vmem:[#allocation2 + $0x2f8] sm:$0xff]
    %v274 = vld [vmem:[#allocation2 + $0x300] sm:$0xff]
    %v275 = vld [vmem:[#allocation2 + $0x308] sm:$0xff]
    %v276 = vld [vmem:[#allocation2 + $0x310] sm:$0xff]
    %v277 = vld [vmem:[#allocation2 + $0x318] sm:$0xff]
    %v278 = vld [vmem:[#allocation2 + $0x320] sm:$0xff]
    %v279 = vld [vmem:[#allocation2 + $0x328] sm:$0xff]
    %v280 = vld [vmem:[#allocation2 + $0x330] sm:$0xff]
    %v281 = vld [vmem:[#allocation2 + $0x338] sm:$0xff]
    %v282 = vld [vmem:[#allocation2 + $0x340] sm:$0xff]
    %v283 = vld [vmem:[#allocation2 + $0x348] sm:$0xff]
    %v284 = vld [vmem:[#allocation2 + $0x350] sm:$0xff]
    %v285 = vld [vmem:[#allocation2 + $0x358] sm:$0xff]
    %v286 = vld [vmem:[#allocation2 + $0x360] sm:$0xff]
    %v287 = vld [vmem:[#allocation2 + $0x368] sm:$0xff]
    %v288 = vld [vmem:[#allocation2 + $0x370] sm:$0xff]
    %v289 = vld [vmem:[#allocation2 + $0x378] sm:$0xff]
    %v290 = vld [vmem:[#allocation2 + $0x380] sm:$0xff]
    %v291 = vld [vmem:[#allocation2 + $0x388] sm:$0xff]
    %v292 = vld [vmem:[#allocation2 + $0x390] sm:$0xff]
    %v293 = vld [vmem:[#allocation2 + $0x398] sm:$0xff]
    %v294 = vld [vmem:[#allocation2 + $0x3a0] sm:$0xff]
    %v295 = vld [vmem:[#allocation2 + $0x3a8] sm:$0xff]
    %v296 = vld [vmem:[#allocation2 + $0x3b0] sm:$0xff]
    %v297 = vld [vmem:[#allocation2 + $0x3b8] sm:$0xff]
    %v298 = vld [vmem:[#allocation2 + $0x3c0] sm:$0xff]
    %v299 = vld [vmem:[#allocation2 + $0x3c8] sm:$0xff]
    %v300 = vld [vmem:[#allocation2 + $0x3d0] sm:$0xff]
    %v301 = vld [vmem:[#allocation2 + $0x3d8] sm:$0xff]
    %v302 = vld [vmem:[#allocation2 + $0x3e0] sm:$0xff]
    %v303 = vld [vmem:[#allocation2 + $0x3e8] sm:$0xff]
    %v304 = vld [vmem:[#allocation2 + $0x3f0] sm:$0xff]
    %v305 = vld [vmem:[#allocation2 + $0x3f8] sm:$0xff]
    %v306 = vld [vmem:[#allocation2 + $0x400] sm:$0xff]
    %v307 = vld [vmem:[#allocation2 + $0x408] sm:$0xff]
    %v308 = vld [vmem:[#allocation2 + $0x410] sm:$0xff]
    %v309 = vld [vmem:[#allocation2 + $0x418] sm:$0xff]
    %v310 = vld [vmem:[#allocation2 + $0x420] sm:$0xff]
    %v311 = vld [vmem:[#allocation2 + $0x428] sm:$0xff]
    %v312 = vld [vmem:[#allocation2 + $0x430] sm:$0xff]
    %v313 = vld [vmem:[#allocation2 + $0x438] sm:$0xff]
    %v314 = vld [vmem:[#allocation2 + $0x440] sm:$0xff]
    %v315 = vld [vmem:[#allocation2 + $0x448] sm:$0xff]
    %v316 = vld [vmem:[#allocation2 + $0x450] sm:$0xff]
    %v317 = vld [vmem:[#allocation2 + $0x458] sm:$0xff]
    %v318 = vld [vmem:[#allocation2 + $0x460] sm:$0xff]
    %v319 = vld [vmem:[#allocation2 + $0x468] sm:$0xff]
    %v320 = vld [vmem:[#allocation2 + $0x470] sm:$0xff]
    %v321 = vld [vmem:[#allocation2 + $0x478] sm:$0xff]
    %v322 = vld [vmem:[#allocation2 + $0x480] sm:$0xff]
    %v323 = vld [vmem:[#allocation2 + $0x488] sm:$0xff]
    %v324 = vld [vmem:[#allocation2 + $0x490] sm:$0xff]
    %v325 = vld [vmem:[#allocation2 + $0x498] sm:$0xff]
    %v326 = vld [vmem:[#allocation2 + $0x4a0] sm:$0xff]
    %v327 = vld [vmem:[#allocation2 + $0x4a8] sm:$0xff]
    %v328 = vld [vmem:[#allocation2 + $0x4b0] sm:$0xff]
    %v329 = vld [vmem:[#allocation2 + $0x4b8] sm:$0xff]
    %v330 = vld [vmem:[#allocation2 + $0x4c0] sm:$0xff]
    %v331 = vld [vmem:[#allocation2 + $0x4c8] sm:$0xff]
    %v332 = vld [vmem:[#allocation2 + $0x4d0] sm:$0xff]
    %v333 = vld [vmem:[#allocation2 + $0x4d8] sm:$0xff]
    %v334 = vld [vmem:[#allocation2 + $0x4e0] sm:$0xff]
    %v335 = vld [vmem:[#allocation2 + $0x4e8] sm:$0xff]
    %v336 = vld [vmem:[#allocation2 + $0x4f0] sm:$0xff]
    %v337 = vld [vmem:[#allocation2 + $0x4f8] sm:$0xff]
    %v338 = vld [vmem:[#allocation2 + $0x500] sm:$0xff]
    %v339 = vld [vmem:[#allocation2 + $0x508] sm:$0xff]
    %v340 = vld [vmem:[#allocation2 + $0x510] sm:$0xff]
    %v341 = vld [vmem:[#allocation2 + $0x518] sm:$0xff]
    %v342 = vld [vmem:[#allocation2 + $0x520] sm:$0xff]
    %v343 = vld [vmem:[#allocation2 + $0x528] sm:$0xff]
    %v344 = vld [vmem:[#allocation2 + $0x530] sm:$0xff]
    %v345 = vld [vmem:[#allocation2 + $0x538] sm:$0xff]
    %v346 = vld [vmem:[#allocation2 + $0x540] sm:$0xff]
    %v347 = vld [vmem:[#allocation2 + $0x548] sm:$0xff]
    %v348 = vld [vmem:[#allocation2 + $0x550] sm:$0xff]
    %v349 = vld [vmem:[#allocation2 + $0x558] sm:$0xff]
    %v350 = vld [vmem:[#allocation2 + $0x560] sm:$0xff]
    %v351 = vld [vmem:[#allocation2 + $0x568] sm:$0xff]
    %v352 = vld [vmem:[#allocation2 + $0x570] sm:$0xff]
    %v353 = vld [vmem:[#allocation2 + $0x578] sm:$0xff]
    %v354 = vld [vmem:[#allocation2 + $0x580] sm:$0xff]
    %v355 = vld [vmem:[#allocation2 + $0x588] sm:$0xff]
    %v356 = vld [vmem:[#allocation2 + $0x590] sm:$0xff]
    %v357 = vld [vmem:[#allocation2 + $0x598] sm:$0xff]
    %v358 = vld [vmem:[#allocation2 + $0x5a0] sm:$0xff]
    %v359 = vld [vmem:[#allocation2 + $0x5a8] sm:$0xff]
    %v360 = vld [vmem:[#allocation2 + $0x5b0] sm:$0xff]
    %v361 = vld [vmem:[#allocation2 + $0x5b8] sm:$0xff]
    %v362 = vld [vmem:[#allocation2 + $0x5c0] sm:$0xff]
    %v363 = vld [vmem:[#allocation2 + $0x5c8] sm:$0xff]
    %v364 = vld [vmem:[#allocation2 + $0x5d0] sm:$0xff]
    %v365 = vld [vmem:[#allocation2 + $0x5d8] sm:$0xff]
    %v366 = vld [vmem:[#allocation2 + $0x5e0] sm:$0xff]
    %v367 = vld [vmem:[#allocation2 + $0x5e8] sm:$0xff]
    %v368 = vld [vmem:[#allocation2 + $0x5f0] sm:$0xff]
    %v369 = vld [vmem:[#allocation2 + $0x5f8] sm:$0xff]
    %v370 = vld [vmem:[#allocation2 + $0x600] sm:$0xff]
    %v371 = vld [vmem:[#allocation2 + $0x608] sm:$0xff]
    %v372 = vld [vmem:[#allocation2 + $0x610] sm:$0xff]
    %v373 = vld [vmem:[#allocation2 + $0x618] sm:$0xff]
    %v374 = vld [vmem:[#allocation2 + $0x620] sm:$0xff]
    %v375 = vld [vmem:[#allocation2 + $0x628] sm:$0xff]
    %v376 = vld [vmem:[#allocation2 + $0x630] sm:$0xff]
    %v377 = vld [vmem:[#allocation2 + $0x638] sm:$0xff]
    %v378 = vld [vmem:[#allocation2 + $0x640] sm:$0xff]
    %v379 = vld [vmem:[#allocation2 + $0x648] sm:$0xff]
    %v380 = vld [vmem:[#allocation2 + $0x650] sm:$0xff]
    %v381 = vld [vmem:[#allocation2 + $0x658] sm:$0xff]
    %v382 = vld [vmem:[#allocation2 + $0x660] sm:$0xff]
    %v383 = vld [vmem:[#allocation2 + $0x668] sm:$0xff]
    %v384 = vld [vmem:[#allocation2 + $0x670] sm:$0xff]
    %v385 = vld [vmem:[#allocation2 + $0x678] sm:$0xff]
    %v386 = vld [vmem:[#allocation2 + $0x680] sm:$0xff]
    %v387 = vld [vmem:[#allocation2 + $0x688] sm:$0xff]
    %v388 = vld [vmem:[#allocation2 + $0x690] sm:$0xff]
    %v389 = vld [vmem:[#allocation2 + $0x698] sm:$0xff]
    %v390 = vld [vmem:[#allocation2 + $0x6a0] sm:$0xff]
    %v391 = vld [vmem:[#allocation2 + $0x6a8] sm:$0xff]
    %v392 = vld [vmem:[#allocation2 + $0x6b0] sm:$0xff]
    %v393 = vld [vmem:[#allocation2 + $0x6b8] sm:$0xff]
    %v394 = vld [vmem:[#allocation2 + $0x6c0] sm:$0xff]
    %v395 = vld [vmem:[#allocation2 + $0x6c8] sm:$0xff]
    %v396 = vld [vmem:[#allocation2 + $0x6d0] sm:$0xff]
    %v397 = vld [vmem:[#allocation2 + $0x6d8] sm:$0xff]
    %v398 = vld [vmem:[#allocation2 + $0x6e0] sm:$0xff]
    %v399 = vld [vmem:[#allocation2 + $0x6e8] sm:$0xff]
    %v400 = vld [vmem:[#allocation2 + $0x6f0] sm:$0xff]
    %v401 = vld [vmem:[#allocation2 + $0x6f8] sm:$0xff]
    %v402 = vld [vmem:[#allocation4] sm:$0x3]
    %v404 = vperm.slane %v402, 0
    %v405 = vperm.slane %v402, 1
    %408 = vmatpush.msra.mxu0 %v208
    %409 = vmatpush.msra.mxu0 %v206
    %410 = vmatpush.msra.mxu0 %v204
    %411 = vmatpush.msra.mxu0 %v202
    %412 = vmatpush.msra.mxu0 %v200
    %413 = vmatpush.msra.mxu0 %v198
    %414 = vmatpush.msra.mxu0 %v196
    %415 = vmatpush.msra.mxu0 %v194
    %416 = vmatpush.msra.mxu0 %v192
    %417 = vmatpush.msra.mxu0 %v190
    %418 = vmatpush.msra.mxu0 %v188
    %419 = vmatpush.msra.mxu0 %v186
    %420 = vmatpush.msra.mxu0 %v184
    %421 = vmatpush.msra.mxu0 %v182
    %422 = vmatpush.msra.mxu0 %v180
    %423 = vmatpush.msra.mxu0 %v178
    %424 = vmatmul.f32.gmra.mxu0 %v171
    %v425 = vpop.f32.mrf.mxu0
    %v426 = vadd.f32 %v404, %v425
    %427 = vdwg.mxu0
    %428 = vmatpush.msra.mxu0 %v240
    %429 = vmatpush.msra.mxu0 %v238
    %430 = vmatpush.msra.mxu0 %v236
    %431 = vmatpush.msra.mxu0 %v234
    %432 = vmatpush.msra.mxu0 %v232
    %433 = vmatpush.msra.mxu0 %v230
    %434 = vmatpush.msra.mxu0 %v228
    %435 = vmatpush.msra.mxu0 %v226
    %436 = vmatpush.msra.mxu0 %v224
    %437 = vmatpush.msra.mxu0 %v222
    %438 = vmatpush.msra.mxu0 %v220
    %439 = vmatpush.msra.mxu0 %v218
    %440 = vmatpush.msra.mxu0 %v216
    %441 = vmatpush.msra.mxu0 %v214
    %442 = vmatpush.msra.mxu0 %v212
    %443 = vmatpush.msra.mxu0 %v210
    %444 = vmatmul.f32.gmra.mxu0 %v172
    %v445 = vpop.f32.mrf.mxu0
    %v446 = vadd.f32 %v426, %v445
    %447 = vdwg.mxu0
    %448 = vmatpush.msra.mxu0 %v272
    %449 = vmatpush.msra.mxu0 %v270
    %450 = vmatpush.msra.mxu0 %v268
    %451 = vmatpush.msra.mxu0 %v266
    %452 = vmatpush.msra.mxu0 %v264
    %453 = vmatpush.msra.mxu0 %v262
    %454 = vmatpush.msra.mxu0 %v260
    %455 = vmatpush.msra.mxu0 %v258
    %456 = vmatpush.msra.mxu0 %v256
    %457 = vmatpush.msra.mxu0 %v254
    %458 = vmatpush.msra.mxu0 %v252
    %459 = vmatpush.msra.mxu0 %v250
    %460 = vmatpush.msra.mxu0 %v248
    %461 = vmatpush.msra.mxu0 %v246
    %462 = vmatpush.msra.mxu0 %v244
    %463 = vmatpush.msra.mxu0 %v242
    %464 = vmatmul.f32.gmra.mxu0 %v173
    %v465 = vpop.f32.mrf.mxu0
    %v466 = vadd.f32 %v446, %v465
    %467 = vdwg.mxu0
    %468 = vmatpush.msra.mxu0 %v304
    %469 = vmatpush.msra.mxu0 %v302
    %470 = vmatpush.msra.mxu0 %v300
    %471 = vmatpush.msra.mxu0 %v298
    %472 = vmatpush.msra.mxu0 %v296
    %473 = vmatpush.msra.mxu0 %v294
    %474 = vmatpush.msra.mxu0 %v292
    %475 = vmatpush.msra.mxu0 %v290
    %476 = vmatpush.msra.mxu0 %v288
    %477 = vmatpush.msra.mxu0 %v286
    %478 = vmatpush.msra.mxu0 %v284
    %479 = vmatpush.msra.mxu0 %v282
    %480 = vmatpush.msra.mxu0 %v280
    %481 = vmatpush.msra.mxu0 %v278
    %482 = vmatpush.msra.mxu0 %v276
    %483 = vmatpush.msra.mxu0 %v274
    %484 = vmatmul.f32.gmra.mxu0 %v174
    %v485 = vpop.f32.mrf.mxu0
    %v486 = vadd.f32 %v466, %v485
    %487 = vdwg.mxu0
    %488 = vmatpush.msra.mxu0 %v336
    %489 = vmatpush.msra.mxu0 %v334
    %490 = vmatpush.msra.mxu0 %v332
    %491 = vmatpush.msra.mxu0 %v330
    %492 = vmatpush.msra.mxu0 %v328
    %493 = vmatpush.msra.mxu0 %v326
    %494 = vmatpush.msra.mxu0 %v324
    %495 = vmatpush.msra.mxu0 %v322
    %496 = vmatpush.msra.mxu0 %v320
    %497 = vmatpush.msra.mxu0 %v318
    %498 = vmatpush.msra.mxu0 %v316
    %499 = vmatpush.msra.mxu0 %v314
    %500 = vmatpush.msra.mxu0 %v312
    %501 = vmatpush.msra.mxu0 %v310
    %502 = vmatpush.msra.mxu0 %v308
    %503 = vmatpush.msra.mxu0 %v306
    %504 = vmatmul.f32.gmra.mxu0 %v175
    %v505 = vpop.f32.mrf.mxu0
    %v506 = vadd.f32 %v486, %v505
    %507 = vdwg.mxu0
    %508 = vmatpush.msra.mxu0 %v368
    %509 = vmatpush.msra.mxu0 %v366
    %510 = vmatpush.msra.mxu0 %v364
    %511 = vmatpush.msra.mxu0 %v362
    %512 = vmatpush.msra.mxu0 %v360
    %513 = vmatpush.msra.mxu0 %v358
    %514 = vmatpush.msra.mxu0 %v356
    %515 = vmatpush.msra.mxu0 %v354
    %516 = vmatpush.msra.mxu0 %v352
    %517 = vmatpush.msra.mxu0 %v350
    %518 = vmatpush.msra.mxu0 %v348
    %519 = vmatpush.msra.mxu0 %v346
    %520 = vmatpush.msra.mxu0 %v344
    %521 = vmatpush.msra.mxu0 %v342
    %522 = vmatpush.msra.mxu0 %v340
    %523 = vmatpush.msra.mxu0 %v338
    %524 = vmatmul.f32.gmra.mxu0 %v176
    %v525 = vpop.f32.mrf.mxu0
    %v526 = vadd.f32 %v506, %v525
    %527 = vdwg.mxu0
    %528 = vmatpush.msra.mxu0 %v400
    %529 = vmatpush.msra.mxu0 %v398
    %530 = vmatpush.msra.mxu0 %v396
    %531 = vmatpush.msra.mxu0 %v394
    %532 = vmatpush.msra.mxu0 %v392
    %533 = vmatpush.msra.mxu0 %v390
    %534 = vmatpush.msra.mxu0 %v388
    %535 = vmatpush.msra.mxu0 %v386
    %536 = vmatpush.msra.mxu0 %v384
    %537 = vmatpush.msra.mxu0 %v382
    %538 = vmatpush.msra.mxu0 %v380
    %539 = vmatpush.msra.mxu0 %v378
    %540 = vmatpush.msra.mxu0 %v376
    %541 = vmatpush.msra.mxu0 %v374
    %542 = vmatpush.msra.mxu0 %v372
    %543 = vmatpush.msra.mxu0 %v370
    %544 = vmatmul.f32.gmra.mxu0 %v177
    %v545 = vpop.f32.mrf.mxu0
    %v546 = vadd.f32 %v526, %v545
    %547 = vdwg.mxu0
    %548 = vmatpush.msra.mxu0 %v209
    %549 = vmatpush.msra.mxu0 %v207
    %550 = vmatpush.msra.mxu0 %v205
    %551 = vmatpush.msra.mxu0 %v203
    %552 = vmatpush.msra.mxu0 %v201
    %553 = vmatpush.msra.mxu0 %v199
    %554 = vmatpush.msra.mxu0 %v197
    %555 = vmatpush.msra.mxu0 %v195
    %556 = vmatpush.msra.mxu0 %v193
    %557 = vmatpush.msra.mxu0 %v191
    %558 = vmatpush.msra.mxu0 %v189
    %559 = vmatpush.msra.mxu0 %v187
    %560 = vmatpush.msra.mxu0 %v185
    %561 = vmatpush.msra.mxu0 %v183
    %562 = vmatpush.msra.mxu0 %v181
    %563 = vmatpush.msra.mxu0 %v179
    %564 = vmatmul.f32.gmra.mxu0 %v171
    %v565 = vpop.f32.mrf.mxu0
    %v566 = vadd.f32 %v405, %v565
    %567 = vdwg.mxu0
    %568 = vmatpush.msra.mxu0 %v241
    %569 = vmatpush.msra.mxu0 %v239
    %570 = vmatpush.msra.mxu0 %v237
    %571 = vmatpush.msra.mxu0 %v235
    %572 = vmatpush.msra.mxu0 %v233
    %573 = vmatpush.msra.mxu0 %v231
    %574 = vmatpush.msra.mxu0 %v229
    %575 = vmatpush.msra.mxu0 %v227
    %576 = vmatpush.msra.mxu0 %v225
    %577 = vmatpush.msra.mxu0 %v223
    %578 = vmatpush.msra.mxu0 %v221
    %579 = vmatpush.msra.mxu0 %v219
    %580 = vmatpush.msra.mxu0 %v217
    %581 = vmatpush.msra.mxu0 %v215
    %582 = vmatpush.msra.mxu0 %v213
    %583 = vmatpush.msra.mxu0 %v211
    %584 = vmatmul.f32.gmra.mxu0 %v172
    %v585 = vpop.f32.mrf.mxu0
    %v586 = vadd.f32 %v566, %v585
    %587 = vdwg.mxu0
    %588 = vmatpush.msra.mxu0 %v273
    %589 = vmatpush.msra.mxu0 %v271
    %590 = vmatpush.msra.mxu0 %v269
    %591 = vmatpush.msra.mxu0 %v267
    %592 = vmatpush.msra.mxu0 %v265
    %593 = vmatpush.msra.mxu0 %v263
    %594 = vmatpush.msra.mxu0 %v261
    %595 = vmatpush.msra.mxu0 %v259
    %596 = vmatpush.msra.mxu0 %v257
    %597 = vmatpush.msra.mxu0 %v255
    %598 = vmatpush.msra.mxu0 %v253
    %599 = vmatpush.msra.mxu0 %v251
    %600 = vmatpush.msra.mxu0 %v249
    %601 = vmatpush.msra.mxu0 %v247
    %602 = vmatpush.msra.mxu0 %v245
    %603 = vmatpush.msra.mxu0 %v243
    %604 = vmatmul.f32.gmra.mxu0 %v173
    %v605 = vpop.f32.mrf.mxu0
    %v606 = vadd.f32 %v586, %v605
    %607 = vdwg.mxu0
    %608 = vmatpush.msra.mxu0 %v305
    %609 = vmatpush.msra.mxu0 %v303
    %610 = vmatpush.msra.mxu0 %v301
    %611 = vmatpush.msra.mxu0 %v299
    %612 = vmatpush.msra.mxu0 %v297
    %613 = vmatpush.msra.mxu0 %v295
    %614 = vmatpush.msra.mxu0 %v293
    %615 = vmatpush.msra.mxu0 %v291
    %616 = vmatpush.msra.mxu0 %v289
    %617 = vmatpush.msra.mxu0 %v287
    %618 = vmatpush.msra.mxu0 %v285
    %619 = vmatpush.msra.mxu0 %v283
    %620 = vmatpush.msra.mxu0 %v281
    %621 = vmatpush.msra.mxu0 %v279
    %622 = vmatpush.msra.mxu0 %v277
    %623 = vmatpush.msra.mxu0 %v275
    %624 = vmatmul.f32.gmra.mxu0 %v174
    %v625 = vpop.f32.mrf.mxu0
    %v626 = vadd.f32 %v606, %v625
    %627 = vdwg.mxu0
    %628 = vmatpush.msra.mxu0 %v337
    %629 = vmatpush.msra.mxu0 %v335
    %630 = vmatpush.msra.mxu0 %v333
    %631 = vmatpush.msra.mxu0 %v331
    %632 = vmatpush.msra.mxu0 %v329
    %633 = vmatpush.msra.mxu0 %v327
    %634 = vmatpush.msra.mxu0 %v325
    %635 = vmatpush.msra.mxu0 %v323
    %636 = vmatpush.msra.mxu0 %v321
    %637 = vmatpush.msra.mxu0 %v319
    %638 = vmatpush.msra.mxu0 %v317
    %639 = vmatpush.msra.mxu0 %v315
    %640 = vmatpush.msra.mxu0 %v313
    %641 = vmatpush.msra.mxu0 %v311
    %642 = vmatpush.msra.mxu0 %v309
    %643 = vmatpush.msra.mxu0 %v307
    %644 = vmatmul.f32.gmra.mxu0 %v175
    %v645 = vpop.f32.mrf.mxu0
    %v646 = vadd.f32 %v626, %v645
    %647 = vdwg.mxu0
    %648 = vmatpush.msra.mxu0 %v369
    %649 = vmatpush.msra.mxu0 %v367
    %650 = vmatpush.msra.mxu0 %v365
    %651 = vmatpush.msra.mxu0 %v363
    %652 = vmatpush.msra.mxu0 %v361
    %653 = vmatpush.msra.mxu0 %v359
    %654 = vmatpush.msra.mxu0 %v357
    %655 = vmatpush.msra.mxu0 %v355
    %656 = vmatpush.msra.mxu0 %v353
    %657 = vmatpush.msra.mxu0 %v351
    %658 = vmatpush.msra.mxu0 %v349
    %659 = vmatpush.msra.mxu0 %v347
    %660 = vmatpush.msra.mxu0 %v345
    %661 = vmatpush.msra.mxu0 %v343
    %662 = vmatpush.msra.mxu0 %v341
    %663 = vmatpush.msra.mxu0 %v339
    %664 = vmatmul.f32.gmra.mxu0 %v176
    %v665 = vpop.f32.mrf.mxu0
    %v666 = vadd.f32 %v646, %v665
    %667 = vdwg.mxu0
    %668 = vmatpush.msra.mxu0 %v401
    %669 = vmatpush.msra.mxu0 %v399
    %670 = vmatpush.msra.mxu0 %v397
    %671 = vmatpush.msra.mxu0 %v395
    %672 = vmatpush.msra.mxu0 %v393
    %673 = vmatpush.msra.mxu0 %v391
    %674 = vmatpush.msra.mxu0 %v389
    %675 = vmatpush.msra.mxu0 %v387
    %676 = vmatpush.msra.mxu0 %v385
    %677 = vmatpush.msra.mxu0 %v383
    %678 = vmatpush.msra.mxu0 %v381
    %679 = vmatpush.msra.mxu0 %v379
    %680 = vmatpush.msra.mxu0 %v377
    %681 = vmatpush.msra.mxu0 %v375
    %682 = vmatpush.msra.mxu0 %v373
    %683 = vmatpush.msra.mxu0 %v371
    %684 = vmatmul.f32.gmra.mxu0 %v177
    %v685 = vpop.f32.mrf.mxu0
    %v686 = vadd.f32 %v666, %v685
    %687 = vdwg.mxu0
    %v688 = vmax.f32 %v546, 0.0
    %v689 = vmax.f32 %v686, 0.0
    %v690 = vld [vmem:[#allocation12] sm:$0x3]
    %v692 = vperm.slane %v690, 0
    %v693 = vperm.slane %v690, 1
    %v696 = vmul.f32 %v688, %v692
    %v697 = vmul.f32 %v689, %v693
    %v698 = vld [vmem:[#allocation13] sm:$0x3]
    %v700 = vperm.slane %v698, 0
    %v701 = vperm.slane %v698, 1
    %v704 = vmul.f32 %v546, %v700
    %v705 = vmul.f32 %v686, %v701
    %v706 = vadd.f32 %v696, %v704
    %v707 = vadd.f32 %v697, %v705
    %v708 = vld [vmem:[#allocation15] sm:$0x3]
    %v710 = vperm.slane %v708, 0
    %v711 = vperm.slane %v708, 1
    %v714 = vadd.f32 %v706, %v710
    %v715 = vadd.f32 %v707, %v711
    %v716 = vld [vmem:[#allocation6] sm:$0xff]
    %v717 = vld [vmem:[#allocation6 + $0x8] sm:$0xff]
    %v718 = vld [vmem:[#allocation6 + $0x10] sm:$0xff]
    %v719 = vld [vmem:[#allocation6 + $0x18] sm:$0xff]
    %v720 = vld [vmem:[#allocation6 + $0x20] sm:$0xff]
    %v721 = vld [vmem:[#allocation6 + $0x28] sm:$0xff]
    %v722 = vld [vmem:[#allocation6 + $0x30] sm:$0xff]
    %v723 = vld [vmem:[#allocation6 + $0x38] sm:$0xff]
    %v724 = vld [vmem:[#allocation6 + $0x40] sm:$0xff]
    %v725 = vld [vmem:[#allocation6 + $0x48] sm:$0xff]
    %v726 = vld [vmem:[#allocation6 + $0x50] sm:$0xff]
    %v727 = vld [vmem:[#allocation6 + $0x58] sm:$0xff]
    %v728 = vld [vmem:[#allocation6 + $0x60] sm:$0xff]
    %v729 = vld [vmem:[#allocation6 + $0x68] sm:$0xff]
    %v730 = vld [vmem:[#allocation6 + $0x70] sm:$0xff]
    %v731 = vld [vmem:[#allocation6 + $0x78] sm:$0xff]
    %v732 = vld [vmem:[#allocation6 + $0x80] sm:$0xff]
    %v733 = vld [vmem:[#allocation6 + $0x88] sm:$0xff]
    %v734 = vld [vmem:[#allocation6 + $0x90] sm:$0xff]
    %v735 = vld [vmem:[#allocation6 + $0x98] sm:$0xff]
    %v736 = vld [vmem:[#allocation6 + $0xa0] sm:$0xff]
    %v737 = vld [vmem:[#allocation6 + $0xa8] sm:$0xff]
    %v738 = vld [vmem:[#allocation6 + $0xb0] sm:$0xff]
    %v739 = vld [vmem:[#allocation6 + $0xb8] sm:$0xff]
    %v740 = vld [vmem:[#allocation6 + $0xc0] sm:$0xff]
    %v741 = vld [vmem:[#allocation6 + $0xc8] sm:$0xff]
    %v742 = vld [vmem:[#allocation6 + $0xd0] sm:$0xff]
    %v743 = vld [vmem:[#allocation6 + $0xd8] sm:$0xff]
    %v744 = vld [vmem:[#allocation6 + $0xe0] sm:$0xff]
    %v745 = vld [vmem:[#allocation6 + $0xe8] sm:$0xff]
    %v746 = vld [vmem:[#allocation6 + $0xf0] sm:$0xff]
    %v747 = vld [vmem:[#allocation6 + $0xf8] sm:$0xff]
    %v748 = vld [vmem:[#allocation6 + $0x100] sm:$0xff]
    %v749 = vld [vmem:[#allocation6 + $0x108] sm:$0xff]
    %v750 = vld [vmem:[#allocation6 + $0x110] sm:$0xff]
    %v751 = vld [vmem:[#allocation6 + $0x118] sm:$0xff]
    %v752 = vld [vmem:[#allocation6 + $0x120] sm:$0xff]
    %v753 = vld [vmem:[#allocation6 + $0x128] sm:$0xff]
    %v754 = vld [vmem:[#allocation6 + $0x130] sm:$0xff]
    %v755 = vld [vmem:[#allocation6 + $0x138] sm:$0xff]
    %v756 = vld [vmem:[#allocation6 + $0x140] sm:$0xff]
    %v757 = vld [vmem:[#allocation6 + $0x148] sm:$0xff]
    %v758 = vld [vmem:[#allocation6 + $0x150] sm:$0xff]
    %v759 = vld [vmem:[#allocation6 + $0x158] sm:$0xff]
    %v760 = vld [vmem:[#allocation6 + $0x160] sm:$0xff]
    %v761 = vld [vmem:[#allocation6 + $0x168] sm:$0xff]
    %v762 = vld [vmem:[#allocation6 + $0x170] sm:$0xff]
    %v763 = vld [vmem:[#allocation6 + $0x178] sm:$0xff]
    %v764 = vld [vmem:[#allocation6 + $0x180] sm:$0xff]
    %v765 = vld [vmem:[#allocation6 + $0x188] sm:$0xff]
    %v766 = vld [vmem:[#allocation6 + $0x190] sm:$0xff]
    %v767 = vld [vmem:[#allocation6 + $0x198] sm:$0xff]
    %v768 = vld [vmem:[#allocation6 + $0x1a0] sm:$0xff]
    %v769 = vld [vmem:[#allocation6 + $0x1a8] sm:$0xff]
    %v770 = vld [vmem:[#allocation6 + $0x1b0] sm:$0xff]
    %v771 = vld [vmem:[#allocation6 + $0x1b8] sm:$0xff]
    %v772 = vld [vmem:[#allocation6 + $0x1c0] sm:$0xff]
    %v773 = vld [vmem:[#allocation6 + $0x1c8] sm:$0xff]
    %v774 = vld [vmem:[#allocation6 + $0x1d0] sm:$0xff]
    %v775 = vld [vmem:[#allocation6 + $0x1d8] sm:$0xff]
    %v776 = vld [vmem:[#allocation6 + $0x1e0] sm:$0xff]
    %v777 = vld [vmem:[#allocation6 + $0x1e8] sm:$0xff]
    %v778 = vld [vmem:[#allocation6 + $0x1f0] sm:$0xff]
    %v779 = vld [vmem:[#allocation6 + $0x1f8] sm:$0xff]
    %v780 = vld [vmem:[#allocation7] sm:$0x3]
    %v782 = vperm.slane %v780, 0
    %v783 = vperm.slane %v780, 1
    %786 = vmatpush.msra.mxu0 %v746
    %787 = vmatpush.msra.mxu0 %v744
    %788 = vmatpush.msra.mxu0 %v742
    %789 = vmatpush.msra.mxu0 %v740
    %790 = vmatpush.msra.mxu0 %v738
    %791 = vmatpush.msra.mxu0 %v736
    %792 = vmatpush.msra.mxu0 %v734
    %793 = vmatpush.msra.mxu0 %v732
    %794 = vmatpush.msra.mxu0 %v730
    %795 = vmatpush.msra.mxu0 %v728
    %796 = vmatpush.msra.mxu0 %v726
    %797 = vmatpush.msra.mxu0 %v724
    %798 = vmatpush.msra.mxu0 %v722
    %799 = vmatpush.msra.mxu0 %v720
    %800 = vmatpush.msra.mxu0 %v718
    %801 = vmatpush.msra.mxu0 %v716
    %802 = vmatmul.f32.gmra.mxu0 %v714
    %v803 = vpop.f32.mrf.mxu0
    %v804 = vadd.f32 %v782, %v803
    %805 = vdwg.mxu0
    %806 = vmatpush.msra.mxu0 %v778
    %807 = vmatpush.msra.mxu0 %v776
    %808 = vmatpush.msra.mxu0 %v774
    %809 = vmatpush.msra.mxu0 %v772
    %810 = vmatpush.msra.mxu0 %v770
    %811 = vmatpush.msra.mxu0 %v768
    %812 = vmatpush.msra.mxu0 %v766
    %813 = vmatpush.msra.mxu0 %v764
    %814 = vmatpush.msra.mxu0 %v762
    %815 = vmatpush.msra.mxu0 %v760
    %816 = vmatpush.msra.mxu0 %v758
    %817 = vmatpush.msra.mxu0 %v756
    %818 = vmatpush.msra.mxu0 %v754
    %819 = vmatpush.msra.mxu0 %v752
    %820 = vmatpush.msra.mxu0 %v750
    %821 = vmatpush.msra.mxu0 %v748
    %822 = vmatmul.f32.gmra.mxu0 %v715
    %v823 = vpop.f32.mrf.mxu0
    %v824 = vadd.f32 %v804, %v823
    %825 = vdwg.mxu0
    %826 = vmatpush.msra.mxu0 %v747
    %827 = vmatpush.msra.mxu0 %v745
    %828 = vmatpush.msra.mxu0 %v743
    %829 = vmatpush.msra.mxu0 %v741
    %830 = vmatpush.msra.mxu0 %v739
    %831 = vmatpush.msra.mxu0 %v737
    %832 = vmatpush.msra.mxu0 %v735
    %833 = vmatpush.msra.mxu0 %v733
    %834 = vmatpush.msra.mxu0 %v731
    %835 = vmatpush.msra.mxu0 %v729
    %836 = vmatpush.msra.mxu0 %v727
    %837 = vmatpush.msra.mxu0 %v725
    %838 = vmatpush.msra.mxu0 %v723
    %839 = vmatpush.msra.mxu0 %v721
    %840 = vmatpush.msra.mxu0 %v719
    %841 = vmatpush.msra.mxu0 %v717
    %842 = vmatmul.f32.gmra.mxu0 %v714
    %v843 = vpop.f32.mrf.mxu0
    %v844 = vadd.f32 %v783, %v843
    %845 = vdwg.mxu0
    %846 = vmatpush.msra.mxu0 %v779
    %847 = vmatpush.msra.mxu0 %v777
    %848 = vmatpush.msra.mxu0 %v775
    %849 = vmatpush.msra.mxu0 %v773
    %850 = vmatpush.msra.mxu0 %v771
    %851 = vmatpush.msra.mxu0 %v769
    %852 = vmatpush.msra.mxu0 %v767
    %853 = vmatpush.msra.mxu0 %v765
    %854 = vmatpush.msra.mxu0 %v763
    %855 = vmatpush.msra.mxu0 %v761
    %856 = vmatpush.msra.mxu0 %v759
    %857 = vmatpush.msra.mxu0 %v757
    %858 = vmatpush.msra.mxu0 %v755
    %859 = vmatpush.msra.mxu0 %v753
    %860 = vmatpush.msra.mxu0 %v751
    %861 = vmatpush.msra.mxu0 %v749
    %862 = vmatmul.f32.gmra.mxu0 %v715
    %v863 = vpop.f32.mrf.mxu0
    %v864 = vadd.f32 %v844, %v863
    %865 = vdwg.mxu0
    %v866 = vmax.f32 %v824, 0.0
    %v867 = vmax.f32 %v864, 0.0
    %s868 = scalar_lea.vmem [#allocation12], 2
    %v869 = vld [vmem:[%s868] sm:$0x3]
    %v871 = vperm.slane %v869, 0
    %v872 = vperm.slane %v869, 1
    %v875 = vmul.f32 %v866, %v871
    %v876 = vmul.f32 %v867, %v872
    %s877 = scalar_lea.vmem [#allocation13], 2
    %v878 = vld [vmem:[%s877] sm:$0x3]
    %v880 = vperm.slane %v878, 0
    %v881 = vperm.slane %v878, 1
    %v884 = vmul.f32 %v824, %v880
    %v885 = vmul.f32 %v864, %v881
    %v886 = vadd.f32 %v875, %v884
    %v887 = vadd.f32 %v876, %v885
    %s888 = scalar_lea.vmem [#allocation15], 2
    %v889 = vld [vmem:[%s888] sm:$0x3]
    %v891 = vperm.slane %v889, 0
    %v892 = vperm.slane %v889, 1
    %v895 = vadd.f32 %v886, %v891
    %v896 = vadd.f32 %v887, %v892
    %s897 = scalar_lea.vmem [#allocation6], 512
    %v898 = vld [vmem:[%s897] sm:$0xff]
    %v899 = vld [vmem:[%s897 + $0x8] sm:$0xff]
    %v900 = vld [vmem:[%s897 + $0x10] sm:$0xff]
    %v901 = vld [vmem:[%s897 + $0x18] sm:$0xff]
    %v902 = vld [vmem:[%s897 + $0x20] sm:$0xff]
    %v903 = vld [vmem:[%s897 + $0x28] sm:$0xff]
    %v904 = vld [vmem:[%s897 + $0x30] sm:$0xff]
    %v905 = vld [vmem:[%s897 + $0x38] sm:$0xff]
    %v906 = vld [vmem:[%s897 + $0x40] sm:$0xff]
    %v907 = vld [vmem:[%s897 + $0x48] sm:$0xff]
    %v908 = vld [vmem:[%s897 + $0x50] sm:$0xff]
    %v909 = vld [vmem:[%s897 + $0x58] sm:$0xff]
    %v910 = vld [vmem:[%s897 + $0x60] sm:$0xff]
    %v911 = vld [vmem:[%s897 + $0x68] sm:$0xff]
    %v912 = vld [vmem:[%s897 + $0x70] sm:$0xff]
    %v913 = vld [vmem:[%s897 + $0x78] sm:$0xff]
    %v914 = vld [vmem:[%s897 + $0x80] sm:$0xff]
    %v915 = vld [vmem:[%s897 + $0x88] sm:$0xff]
    %v916 = vld [vmem:[%s897 + $0x90] sm:$0xff]
    %v917 = vld [vmem:[%s897 + $0x98] sm:$0xff]
    %v918 = vld [vmem:[%s897 + $0xa0] sm:$0xff]
    %v919 = vld [vmem:[%s897 + $0xa8] sm:$0xff]
    %v920 = vld [vmem:[%s897 + $0xb0] sm:$0xff]
    %v921 = vld [vmem:[%s897 + $0xb8] sm:$0xff]
    %v922 = vld [vmem:[%s897 + $0xc0] sm:$0xff]
    %v923 = vld [vmem:[%s897 + $0xc8] sm:$0xff]
    %v924 = vld [vmem:[%s897 + $0xd0] sm:$0xff]
    %v925 = vld [vmem:[%s897 + $0xd8] sm:$0xff]
    %v926 = vld [vmem:[%s897 + $0xe0] sm:$0xff]
    %v927 = vld [vmem:[%s897 + $0xe8] sm:$0xff]
    %v928 = vld [vmem:[%s897 + $0xf0] sm:$0xff]
    %v929 = vld [vmem:[%s897 + $0xf8] sm:$0xff]
    %v930 = vld [vmem:[%s897 + $0x100] sm:$0xff]
    %v931 = vld [vmem:[%s897 + $0x108] sm:$0xff]
    %v932 = vld [vmem:[%s897 + $0x110] sm:$0xff]
    %v933 = vld [vmem:[%s897 + $0x118] sm:$0xff]
    %v934 = vld [vmem:[%s897 + $0x120] sm:$0xff]
    %v935 = vld [vmem:[%s897 + $0x128] sm:$0xff]
    %v936 = vld [vmem:[%s897 + $0x130] sm:$0xff]
    %v937 = vld [vmem:[%s897 + $0x138] sm:$0xff]
    %v938 = vld [vmem:[%s897 + $0x140] sm:$0xff]
    %v939 = vld [vmem:[%s897 + $0x148] sm:$0xff]
    %v940 = vld [vmem:[%s897 + $0x150] sm:$0xff]
    %v941 = vld [vmem:[%s897 + $0x158] sm:$0xff]
    %v942 = vld [vmem:[%s897 + $0x160] sm:$0xff]
    %v943 = vld [vmem:[%s897 + $0x168] sm:$0xff]
    %v944 = vld [vmem:[%s897 + $0x170] sm:$0xff]
    %v945 = vld [vmem:[%s897 + $0x178] sm:$0xff]
    %v946 = vld [vmem:[%s897 + $0x180] sm:$0xff]
    %v947 = vld [vmem:[%s897 + $0x188] sm:$0xff]
    %v948 = vld [vmem:[%s897 + $0x190] sm:$0xff]
    %v949 = vld [vmem:[%s897 + $0x198] sm:$0xff]
    %v950 = vld [vmem:[%s897 + $0x1a0] sm:$0xff]
    %v951 = vld [vmem:[%s897 + $0x1a8] sm:$0xff]
    %v952 = vld [vmem:[%s897 + $0x1b0] sm:$0xff]
    %v953 = vld [vmem:[%s897 + $0x1b8] sm:$0xff]
    %v954 = vld [vmem:[%s897 + $0x1c0] sm:$0xff]
    %v955 = vld [vmem:[%s897 + $0x1c8] sm:$0xff]
    %v956 = vld [vmem:[%s897 + $0x1d0] sm:$0xff]
    %v957 = vld [vmem:[%s897 + $0x1d8] sm:$0xff]
    %v958 = vld [vmem:[%s897 + $0x1e0] sm:$0xff]
    %v959 = vld [vmem:[%s897 + $0x1e8] sm:$0xff]
    %v960 = vld [vmem:[%s897 + $0x1f0] sm:$0xff]
    %v961 = vld [vmem:[%s897 + $0x1f8] sm:$0xff]
    %s962 = scalar_lea.vmem [#allocation7], 2
    %v963 = vld [vmem:[%s962] sm:$0x3]
    %v965 = vperm.slane %v963, 0
    %v966 = vperm.slane %v963, 1
    %969 = vmatpush.msra.mxu0 %v928
    %970 = vmatpush.msra.mxu0 %v926
    %971 = vmatpush.msra.mxu0 %v924
    %972 = vmatpush.msra.mxu0 %v922
    %973 = vmatpush.msra.mxu0 %v920
    %974 = vmatpush.msra.mxu0 %v918
    %975 = vmatpush.msra.mxu0 %v916
    %976 = vmatpush.msra.mxu0 %v914
    %977 = vmatpush.msra.mxu0 %v912
    %978 = vmatpush.msra.mxu0 %v910
    %979 = vmatpush.msra.mxu0 %v908
    %980 = vmatpush.msra.mxu0 %v906
    %981 = vmatpush.msra.mxu0 %v904
    %982 = vmatpush.msra.mxu0 %v902
    %983 = vmatpush.msra.mxu0 %v900
    %984 = vmatpush.msra.mxu0 %v898
    %985 = vmatmul.f32.gmra.mxu0 %v895
    %v986 = vpop.f32.mrf.mxu0
    %v987 = vadd.f32 %v965, %v986
    %988 = vdwg.mxu0
    %989 = vmatpush.msra.mxu0 %v960
    %990 = vmatpush.msra.mxu0 %v958
    %991 = vmatpush.msra.mxu0 %v956
    %992 = vmatpush.msra.mxu0 %v954
    %993 = vmatpush.msra.mxu0 %v952
    %994 = vmatpush.msra.mxu0 %v950
    %995 = vmatpush.msra.mxu0 %v948
    %996 = vmatpush.msra.mxu0 %v946
    %997 = vmatpush.msra.mxu0 %v944
    %998 = vmatpush.msra.mxu0 %v942
    %999 = vmatpush.msra.mxu0 %v940
    %1000 = vmatpush.msra.mxu0 %v938
    %1001 = vmatpush.msra.mxu0 %v936
    %1002 = vmatpush.msra.mxu0 %v934
    %1003 = vmatpush.msra.mxu0 %v932
    %1004 = vmatpush.msra.mxu0 %v930
    %1005 = vmatmul.f32.gmra.mxu0 %v896
    %v1006 = vpop.f32.mrf.mxu0
    %v1007 = vadd.f32 %v987, %v1006
    %1008 = vdwg.mxu0
    %1009 = vmatpush.msra.mxu0 %v929
    %1010 = vmatpush.msra.mxu0 %v927
    %1011 = vmatpush.msra.mxu0 %v925
    %1012 = vmatpush.msra.mxu0 %v923
    %1013 = vmatpush.msra.mxu0 %v921
    %1014 = vmatpush.msra.mxu0 %v919
    %1015 = vmatpush.msra.mxu0 %v917
    %1016 = vmatpush.msra.mxu0 %v915
    %1017 = vmatpush.msra.mxu0 %v913
    %1018 = vmatpush.msra.mxu0 %v911
    %1019 = vmatpush.msra.mxu0 %v909
    %1020 = vmatpush.msra.mxu0 %v907
    %1021 = vmatpush.msra.mxu0 %v905
    %1022 = vmatpush.msra.mxu0 %v903
    %1023 = vmatpush.msra.mxu0 %v901
    %1024 = vmatpush.msra.mxu0 %v899
    %1025 = vmatmul.f32.gmra.mxu0 %v895
    %v1026 = vpop.f32.mrf.mxu0
    %v1027 = vadd.f32 %v966, %v1026
    %1028 = vdwg.mxu0
    %1029 = vmatpush.msra.mxu0 %v961
    %1030 = vmatpush.msra.mxu0 %v959
    %1031 = vmatpush.msra.mxu0 %v957
    %1032 = vmatpush.msra.mxu0 %v955
    %1033 = vmatpush.msra.mxu0 %v953
    %1034 = vmatpush.msra.mxu0 %v951
    %1035 = vmatpush.msra.mxu0 %v949
    %1036 = vmatpush.msra.mxu0 %v947
    %1037 = vmatpush.msra.mxu0 %v945
    %1038 = vmatpush.msra.mxu0 %v943
    %1039 = vmatpush.msra.mxu0 %v941
    %1040 = vmatpush.msra.mxu0 %v939
    %1041 = vmatpush.msra.mxu0 %v937
    %1042 = vmatpush.msra.mxu0 %v935
    %1043 = vmatpush.msra.mxu0 %v933
    %1044 = vmatpush.msra.mxu0 %v931
    %1045 = vmatmul.f32.gmra.mxu0 %v896
    %v1046 = vpop.f32.mrf.mxu0
    %v1047 = vadd.f32 %v1027, %v1046
    %1048 = vdwg.mxu0
    %v1049 = vmax.f32 %v1007, 0.0
    %v1050 = vmax.f32 %v1047, 0.0
    %s1051 = scalar_lea.vmem [#allocation12], 4
    %v1052 = vld [vmem:[%s1051] sm:$0x3]
    %v1054 = vperm.slane %v1052, 0
    %v1055 = vperm.slane %v1052, 1
    %v1058 = vmul.f32 %v1049, %v1054
    %v1059 = vmul.f32 %v1050, %v1055
    %s1060 = scalar_lea.vmem [#allocation13], 4
    %v1061 = vld [vmem:[%s1060] sm:$0x3]
    %v1063 = vperm.slane %v1061, 0
    %v1064 = vperm.slane %v1061, 1
    %v1067 = vmul.f32 %v1007, %v1063
    %v1068 = vmul.f32 %v1047, %v1064
    %v1069 = vadd.f32 %v1058, %v1067
    %v1070 = vadd.f32 %v1059, %v1068
    %s1071 = scalar_lea.vmem [#allocation15], 4
    %v1072 = vld [vmem:[%s1071] sm:$0x3]
    %v1074 = vperm.slane %v1072, 0
    %v1075 = vperm.slane %v1072, 1
    %v1078 = vadd.f32 %v1069, %v1074
    %v1079 = vadd.f32 %v1070, %v1075
    %s1080 = scalar_lea.vmem [#allocation6], 1024
    %v1081 = vld [vmem:[%s1080] sm:$0xff]
    %v1082 = vld [vmem:[%s1080 + $0x8] sm:$0xff]
    %v1083 = vld [vmem:[%s1080 + $0x10] sm:$0xff]
    %v1084 = vld [vmem:[%s1080 + $0x18] sm:$0xff]
    %v1085 = vld [vmem:[%s1080 + $0x20] sm:$0xff]
    %v1086 = vld [vmem:[%s1080 + $0x28] sm:$0xff]
    %v1087 = vld [vmem:[%s1080 + $0x30] sm:$0xff]
    %v1088 = vld [vmem:[%s1080 + $0x38] sm:$0xff]
    %v1089 = vld [vmem:[%s1080 + $0x40] sm:$0xff]
    %v1090 = vld [vmem:[%s1080 + $0x48] sm:$0xff]
    %v1091 = vld [vmem:[%s1080 + $0x50] sm:$0xff]
    %v1092 = vld [vmem:[%s1080 + $0x58] sm:$0xff]
    %v1093 = vld [vmem:[%s1080 + $0x60] sm:$0xff]
    %v1094 = vld [vmem:[%s1080 + $0x68] sm:$0xff]
    %v1095 = vld [vmem:[%s1080 + $0x70] sm:$0xff]
    %v1096 = vld [vmem:[%s1080 + $0x78] sm:$0xff]
    %v1097 = vld [vmem:[%s1080 + $0x80] sm:$0xff]
    %v1098 = vld [vmem:[%s1080 + $0x88] sm:$0xff]
    %v1099 = vld [vmem:[%s1080 + $0x90] sm:$0xff]
    %v1100 = vld [vmem:[%s1080 + $0x98] sm:$0xff]
    %v1101 = vld [vmem:[%s1080 + $0xa0] sm:$0xff]
    %v1102 = vld [vmem:[%s1080 + $0xa8] sm:$0xff]
    %v1103 = vld [vmem:[%s1080 + $0xb0] sm:$0xff]
    %v1104 = vld [vmem:[%s1080 + $0xb8] sm:$0xff]
    %v1105 = vld [vmem:[%s1080 + $0xc0] sm:$0xff]
    %v1106 = vld [vmem:[%s1080 + $0xc8] sm:$0xff]
    %v1107 = vld [vmem:[%s1080 + $0xd0] sm:$0xff]
    %v1108 = vld [vmem:[%s1080 + $0xd8] sm:$0xff]
    %v1109 = vld [vmem:[%s1080 + $0xe0] sm:$0xff]
    %v1110 = vld [vmem:[%s1080 + $0xe8] sm:$0xff]
    %v1111 = vld [vmem:[%s1080 + $0xf0] sm:$0xff]
    %v1112 = vld [vmem:[%s1080 + $0xf8] sm:$0xff]
    %v1113 = vld [vmem:[%s1080 + $0x100] sm:$0xff]
    %v1114 = vld [vmem:[%s1080 + $0x108] sm:$0xff]
    %v1115 = vld [vmem:[%s1080 + $0x110] sm:$0xff]
    %v1116 = vld [vmem:[%s1080 + $0x118] sm:$0xff]
    %v1117 = vld [vmem:[%s1080 + $0x120] sm:$0xff]
    %v1118 = vld [vmem:[%s1080 + $0x128] sm:$0xff]
    %v1119 = vld [vmem:[%s1080 + $0x130] sm:$0xff]
    %v1120 = vld [vmem:[%s1080 + $0x138] sm:$0xff]
    %v1121 = vld [vmem:[%s1080 + $0x140] sm:$0xff]
    %v1122 = vld [vmem:[%s1080 + $0x148] sm:$0xff]
    %v1123 = vld [vmem:[%s1080 + $0x150] sm:$0xff]
    %v1124 = vld [vmem:[%s1080 + $0x158] sm:$0xff]
    %v1125 = vld [vmem:[%s1080 + $0x160] sm:$0xff]
    %v1126 = vld [vmem:[%s1080 + $0x168] sm:$0xff]
    %v1127 = vld [vmem:[%s1080 + $0x170] sm:$0xff]
    %v1128 = vld [vmem:[%s1080 + $0x178] sm:$0xff]
    %v1129 = vld [vmem:[%s1080 + $0x180] sm:$0xff]
    %v1130 = vld [vmem:[%s1080 + $0x188] sm:$0xff]
    %v1131 = vld [vmem:[%s1080 + $0x190] sm:$0xff]
    %v1132 = vld [vmem:[%s1080 + $0x198] sm:$0xff]
    %v1133 = vld [vmem:[%s1080 + $0x1a0] sm:$0xff]
    %v1134 = vld [vmem:[%s1080 + $0x1a8] sm:$0xff]
    %v1135 = vld [vmem:[%s1080 + $0x1b0] sm:$0xff]
    %v1136 = vld [vmem:[%s1080 + $0x1b8] sm:$0xff]
    %v1137 = vld [vmem:[%s1080 + $0x1c0] sm:$0xff]
    %v1138 = vld [vmem:[%s1080 + $0x1c8] sm:$0xff]
    %v1139 = vld [vmem:[%s1080 + $0x1d0] sm:$0xff]
    %v1140 = vld [vmem:[%s1080 + $0x1d8] sm:$0xff]
    %v1141 = vld [vmem:[%s1080 + $0x1e0] sm:$0xff]
    %v1142 = vld [vmem:[%s1080 + $0x1e8] sm:$0xff]
    %v1143 = vld [vmem:[%s1080 + $0x1f0] sm:$0xff]
    %v1144 = vld [vmem:[%s1080 + $0x1f8] sm:$0xff]
    %s1145 = scalar_lea.vmem [#allocation7], 4
    %v1146 = vld [vmem:[%s1145] sm:$0x3]
    %v1148 = vperm.slane %v1146, 0
    %v1149 = vperm.slane %v1146, 1
    %1152 = vmatpush.msra.mxu0 %v1111
    %1153 = vmatpush.msra.mxu0 %v1109
    %1154 = vmatpush.msra.mxu0 %v1107
    %1155 = vmatpush.msra.mxu0 %v1105
    %1156 = vmatpush.msra.mxu0 %v1103
    %1157 = vmatpush.msra.mxu0 %v1101
    %1158 = vmatpush.msra.mxu0 %v1099
    %1159 = vmatpush.msra.mxu0 %v1097
    %1160 = vmatpush.msra.mxu0 %v1095
    %1161 = vmatpush.msra.mxu0 %v1093
    %1162 = vmatpush.msra.mxu0 %v1091
    %1163 = vmatpush.msra.mxu0 %v1089
    %1164 = vmatpush.msra.mxu0 %v1087
    %1165 = vmatpush.msra.mxu0 %v1085
    %1166 = vmatpush.msra.mxu0 %v1083
    %1167 = vmatpush.msra.mxu0 %v1081
    %1168 = vmatmul.f32.gmra.mxu0 %v1078
    %v1169 = vpop.f32.mrf.mxu0
    %v1170 = vadd.f32 %v1148, %v1169
    %1171 = vdwg.mxu0
    %1172 = vmatpush.msra.mxu0 %v1143
    %1173 = vmatpush.msra.mxu0 %v1141
    %1174 = vmatpush.msra.mxu0 %v1139
    %1175 = vmatpush.msra.mxu0 %v1137
    %1176 = vmatpush.msra.mxu0 %v1135
    %1177 = vmatpush.msra.mxu0 %v1133
    %1178 = vmatpush.msra.mxu0 %v1131
    %1179 = vmatpush.msra.mxu0 %v1129
    %1180 = vmatpush.msra.mxu0 %v1127
    %1181 = vmatpush.msra.mxu0 %v1125
    %1182 = vmatpush.msra.mxu0 %v1123
    %1183 = vmatpush.msra.mxu0 %v1121
    %1184 = vmatpush.msra.mxu0 %v1119
    %1185 = vmatpush.msra.mxu0 %v1117
    %1186 = vmatpush.msra.mxu0 %v1115
    %1187 = vmatpush.msra.mxu0 %v1113
    %1188 = vmatmul.f32.gmra.mxu0 %v1079
    %v1189 = vpop.f32.mrf.mxu0
    %v1190 = vadd.f32 %v1170, %v1189
    %1191 = vdwg.mxu0
    %1192 = vmatpush.msra.mxu0 %v1112
    %1193 = vmatpush.msra.mxu0 %v1110
    %1194 = vmatpush.msra.mxu0 %v1108
    %1195 = vmatpush.msra.mxu0 %v1106
    %1196 = vmatpush.msra.mxu0 %v1104
    %1197 = vmatpush.msra.mxu0 %v1102
    %1198 = vmatpush.msra.mxu0 %v1100
    %1199 = vmatpush.msra.mxu0 %v1098
    %1200 = vmatpush.msra.mxu0 %v1096
    %1201 = vmatpush.msra.mxu0 %v1094
    %1202 = vmatpush.msra.mxu0 %v1092
    %1203 = vmatpush.msra.mxu0 %v1090
    %1204 = vmatpush.msra.mxu0 %v1088
    %1205 = vmatpush.msra.mxu0 %v1086
    %1206 = vmatpush.msra.mxu0 %v1084
    %1207 = vmatpush.msra.mxu0 %v1082
    %1208 = vmatmul.f32.gmra.mxu0 %v1078
    %v1209 = vpop.f32.mrf.mxu0
    %v1210 = vadd.f32 %v1149, %v1209
    %1211 = vdwg.mxu0
    %1212 = vmatpush.msra.mxu0 %v1144
    %1213 = vmatpush.msra.mxu0 %v1142
    %1214 = vmatpush.msra.mxu0 %v1140
    %1215 = vmatpush.msra.mxu0 %v1138
    %1216 = vmatpush.msra.mxu0 %v1136
    %1217 = vmatpush.msra.mxu0 %v1134
    %1218 = vmatpush.msra.mxu0 %v1132
    %1219 = vmatpush.msra.mxu0 %v1130
    %1220 = vmatpush.msra.mxu0 %v1128
    %1221 = vmatpush.msra.mxu0 %v1126
    %1222 = vmatpush.msra.mxu0 %v1124
    %1223 = vmatpush.msra.mxu0 %v1122
    %1224 = vmatpush.msra.mxu0 %v1120
    %1225 = vmatpush.msra.mxu0 %v1118
    %1226 = vmatpush.msra.mxu0 %v1116
    %1227 = vmatpush.msra.mxu0 %v1114
    %1228 = vmatmul.f32.gmra.mxu0 %v1079
    %v1229 = vpop.f32.mrf.mxu0
    %v1230 = vadd.f32 %v1210, %v1229
    %1231 = vdwg.mxu0
    %v1232 = vmax.f32 %v1190, 0.0
    %v1233 = vmax.f32 %v1230, 0.0
    %s1234 = scalar_lea.vmem [#allocation12], 6
    %v1235 = vld [vmem:[%s1234] sm:$0x3]
    %v1237 = vperm.slane %v1235, 0
    %v1238 = vperm.slane %v1235, 1
    %v1241 = vmul.f32 %v1232, %v1237
    %v1242 = vmul.f32 %v1233, %v1238
    %s1243 = scalar_lea.vmem [#allocation13], 6
    %v1244 = vld [vmem:[%s1243] sm:$0x3]
    %v1246 = vperm.slane %v1244, 0
    %v1247 = vperm.slane %v1244, 1
    %v1250 = vmul.f32 %v1190, %v1246
    %v1251 = vmul.f32 %v1230, %v1247
    %v1252 = vadd.f32 %v1241, %v1250
    %v1253 = vadd.f32 %v1242, %v1251
    %s1254 = scalar_lea.vmem [#allocation15], 6
    %v1255 = vld [vmem:[%s1254] sm:$0x3]
    %v1257 = vperm.slane %v1255, 0
    %v1258 = vperm.slane %v1255, 1
    %v1261 = vadd.f32 %v1252, %v1257
    %v1262 = vadd.f32 %v1253, %v1258
    %s1263 = scalar_lea.vmem [#allocation6], 1536
    %v1264 = vld [vmem:[%s1263] sm:$0xff]
    %v1265 = vld [vmem:[%s1263 + $0x8] sm:$0xff]
    %v1266 = vld [vmem:[%s1263 + $0x10] sm:$0xff]
    %v1267 = vld [vmem:[%s1263 + $0x18] sm:$0xff]
    %v1268 = vld [vmem:[%s1263 + $0x20] sm:$0xff]
    %v1269 = vld [vmem:[%s1263 + $0x28] sm:$0xff]
    %v1270 = vld [vmem:[%s1263 + $0x30] sm:$0xff]
    %v1271 = vld [vmem:[%s1263 + $0x38] sm:$0xff]
    %v1272 = vld [vmem:[%s1263 + $0x40] sm:$0xff]
    %v1273 = vld [vmem:[%s1263 + $0x48] sm:$0xff]
    %v1274 = vld [vmem:[%s1263 + $0x50] sm:$0xff]
    %v1275 = vld [vmem:[%s1263 + $0x58] sm:$0xff]
    %v1276 = vld [vmem:[%s1263 + $0x60] sm:$0xff]
    %v1277 = vld [vmem:[%s1263 + $0x68] sm:$0xff]
    %v1278 = vld [vmem:[%s1263 + $0x70] sm:$0xff]
    %v1279 = vld [vmem:[%s1263 + $0x78] sm:$0xff]
    %v1280 = vld [vmem:[%s1263 + $0x80] sm:$0xff]
    %v1281 = vld [vmem:[%s1263 + $0x88] sm:$0xff]
    %v1282 = vld [vmem:[%s1263 + $0x90] sm:$0xff]
    %v1283 = vld [vmem:[%s1263 + $0x98] sm:$0xff]
    %v1284 = vld [vmem:[%s1263 + $0xa0] sm:$0xff]
    %v1285 = vld [vmem:[%s1263 + $0xa8] sm:$0xff]
    %v1286 = vld [vmem:[%s1263 + $0xb0] sm:$0xff]
    %v1287 = vld [vmem:[%s1263 + $0xb8] sm:$0xff]
    %v1288 = vld [vmem:[%s1263 + $0xc0] sm:$0xff]
    %v1289 = vld [vmem:[%s1263 + $0xc8] sm:$0xff]
    %v1290 = vld [vmem:[%s1263 + $0xd0] sm:$0xff]
    %v1291 = vld [vmem:[%s1263 + $0xd8] sm:$0xff]
    %v1292 = vld [vmem:[%s1263 + $0xe0] sm:$0xff]
    %v1293 = vld [vmem:[%s1263 + $0xe8] sm:$0xff]
    %v1294 = vld [vmem:[%s1263 + $0xf0] sm:$0xff]
    %v1295 = vld [vmem:[%s1263 + $0xf8] sm:$0xff]
    %v1296 = vld [vmem:[%s1263 + $0x100] sm:$0xff]
    %v1297 = vld [vmem:[%s1263 + $0x108] sm:$0xff]
    %v1298 = vld [vmem:[%s1263 + $0x110] sm:$0xff]
    %v1299 = vld [vmem:[%s1263 + $0x118] sm:$0xff]
    %v1300 = vld [vmem:[%s1263 + $0x120] sm:$0xff]
    %v1301 = vld [vmem:[%s1263 + $0x128] sm:$0xff]
    %v1302 = vld [vmem:[%s1263 + $0x130] sm:$0xff]
    %v1303 = vld [vmem:[%s1263 + $0x138] sm:$0xff]
    %v1304 = vld [vmem:[%s1263 + $0x140] sm:$0xff]
    %v1305 = vld [vmem:[%s1263 + $0x148] sm:$0xff]
    %v1306 = vld [vmem:[%s1263 + $0x150] sm:$0xff]
    %v1307 = vld [vmem:[%s1263 + $0x158] sm:$0xff]
    %v1308 = vld [vmem:[%s1263 + $0x160] sm:$0xff]
    %v1309 = vld [vmem:[%s1263 + $0x168] sm:$0xff]
    %v1310 = vld [vmem:[%s1263 + $0x170] sm:$0xff]
    %v1311 = vld [vmem:[%s1263 + $0x178] sm:$0xff]
    %v1312 = vld [vmem:[%s1263 + $0x180] sm:$0xff]
    %v1313 = vld [vmem:[%s1263 + $0x188] sm:$0xff]
    %v1314 = vld [vmem:[%s1263 + $0x190] sm:$0xff]
    %v1315 = vld [vmem:[%s1263 + $0x198] sm:$0xff]
    %v1316 = vld [vmem:[%s1263 + $0x1a0] sm:$0xff]
    %v1317 = vld [vmem:[%s1263 + $0x1a8] sm:$0xff]
    %v1318 = vld [vmem:[%s1263 + $0x1b0] sm:$0xff]
    %v1319 = vld [vmem:[%s1263 + $0x1b8] sm:$0xff]
    %v1320 = vld [vmem:[%s1263 + $0x1c0] sm:$0xff]
    %v1321 = vld [vmem:[%s1263 + $0x1c8] sm:$0xff]
    %v1322 = vld [vmem:[%s1263 + $0x1d0] sm:$0xff]
    %v1323 = vld [vmem:[%s1263 + $0x1d8] sm:$0xff]
    %v1324 = vld [vmem:[%s1263 + $0x1e0] sm:$0xff]
    %v1325 = vld [vmem:[%s1263 + $0x1e8] sm:$0xff]
    %v1326 = vld [vmem:[%s1263 + $0x1f0] sm:$0xff]
    %v1327 = vld [vmem:[%s1263 + $0x1f8] sm:$0xff]
    %s1328 = scalar_lea.vmem [#allocation7], 6
    %v1329 = vld [vmem:[%s1328] sm:$0x3]
    %v1331 = vperm.slane %v1329, 0
    %v1332 = vperm.slane %v1329, 1
    %1335 = vmatpush.msra.mxu0 %v1294
    %1336 = vmatpush.msra.mxu0 %v1292
    %1337 = vmatpush.msra.mxu0 %v1290
    %1338 = vmatpush.msra.mxu0 %v1288
    %1339 = vmatpush.msra.mxu0 %v1286
    %1340 = vmatpush.msra.mxu0 %v1284
    %1341 = vmatpush.msra.mxu0 %v1282
    %1342 = vmatpush.msra.mxu0 %v1280
    %1343 = vmatpush.msra.mxu0 %v1278
    %1344 = vmatpush.msra.mxu0 %v1276
    %1345 = vmatpush.msra.mxu0 %v1274
    %1346 = vmatpush.msra.mxu0 %v1272
    %1347 = vmatpush.msra.mxu0 %v1270
    %1348 = vmatpush.msra.mxu0 %v1268
    %1349 = vmatpush.msra.mxu0 %v1266
    %1350 = vmatpush.msra.mxu0 %v1264
    %1351 = vmatmul.f32.gmra.mxu0 %v1261
    %v1352 = vpop.f32.mrf.mxu0
    %v1353 = vadd.f32 %v1331, %v1352
    %1354 = vdwg.mxu0
    %1355 = vmatpush.msra.mxu0 %v1326
    %1356 = vmatpush.msra.mxu0 %v1324
    %1357 = vmatpush.msra.mxu0 %v1322
    %1358 = vmatpush.msra.mxu0 %v1320
    %1359 = vmatpush.msra.mxu0 %v1318
    %1360 = vmatpush.msra.mxu0 %v1316
    %1361 = vmatpush.msra.mxu0 %v1314
    %1362 = vmatpush.msra.mxu0 %v1312
    %1363 = vmatpush.msra.mxu0 %v1310
    %1364 = vmatpush.msra.mxu0 %v1308
    %1365 = vmatpush.msra.mxu0 %v1306
    %1366 = vmatpush.msra.mxu0 %v1304
    %1367 = vmatpush.msra.mxu0 %v1302
    %1368 = vmatpush.msra.mxu0 %v1300
    %1369 = vmatpush.msra.mxu0 %v1298
    %1370 = vmatpush.msra.mxu0 %v1296
    %1371 = vmatmul.f32.gmra.mxu0 %v1262
    %v1372 = vpop.f32.mrf.mxu0
    %v1373 = vadd.f32 %v1353, %v1372
    %1374 = vdwg.mxu0
    %1375 = vmatpush.msra.mxu0 %v1295
    %1376 = vmatpush.msra.mxu0 %v1293
    %1377 = vmatpush.msra.mxu0 %v1291
    %1378 = vmatpush.msra.mxu0 %v1289
    %1379 = vmatpush.msra.mxu0 %v1287
    %1380 = vmatpush.msra.mxu0 %v1285
    %1381 = vmatpush.msra.mxu0 %v1283
    %1382 = vmatpush.msra.mxu0 %v1281
    %1383 = vmatpush.msra.mxu0 %v1279
    %1384 = vmatpush.msra.mxu0 %v1277
    %1385 = vmatpush.msra.mxu0 %v1275
    %1386 = vmatpush.msra.mxu0 %v1273
    %1387 = vmatpush.msra.mxu0 %v1271
    %1388 = vmatpush.msra.mxu0 %v1269
    %1389 = vmatpush.msra.mxu0 %v1267
    %1390 = vmatpush.msra.mxu0 %v1265
    %1391 = vmatmul.f32.gmra.mxu0 %v1261
    %v1392 = vpop.f32.mrf.mxu0
    %v1393 = vadd.f32 %v1332, %v1392
    %1394 = vdwg.mxu0
    %1395 = vmatpush.msra.mxu0 %v1327
    %1396 = vmatpush.msra.mxu0 %v1325
    %1397 = vmatpush.msra.mxu0 %v1323
    %1398 = vmatpush.msra.mxu0 %v1321
    %1399 = vmatpush.msra.mxu0 %v1319
    %1400 = vmatpush.msra.mxu0 %v1317
    %1401 = vmatpush.msra.mxu0 %v1315
    %1402 = vmatpush.msra.mxu0 %v1313
    %1403 = vmatpush.msra.mxu0 %v1311
    %1404 = vmatpush.msra.mxu0 %v1309
    %1405 = vmatpush.msra.mxu0 %v1307
    %1406 = vmatpush.msra.mxu0 %v1305
    %1407 = vmatpush.msra.mxu0 %v1303
    %1408 = vmatpush.msra.mxu0 %v1301
    %1409 = vmatpush.msra.mxu0 %v1299
    %1410 = vmatpush.msra.mxu0 %v1297
    %1411 = vmatmul.f32.gmra.mxu0 %v1262
    %v1412 = vpop.f32.mrf.mxu0
    %v1413 = vadd.f32 %v1393, %v1412
    %1414 = vdwg.mxu0
    %v1415 = vmax.f32 %v1373, 0.0
    %v1416 = vmax.f32 %v1413, 0.0
    %s1417 = scalar_lea.vmem [#allocation12], 8
    %v1418 = vld [vmem:[%s1417] sm:$0x3]
    %v1420 = vperm.slane %v1418, 0
    %v1421 = vperm.slane %v1418, 1
    %v1424 = vmul.f32 %v1415, %v1420
    %v1425 = vmul.f32 %v1416, %v1421
    %s1426 = scalar_lea.vmem [#allocation13], 8
    %v1427 = vld [vmem:[%s1426] sm:$0x3]
    %v1429 = vperm.slane %v1427, 0
    %v1430 = vperm.slane %v1427, 1
    %v1433 = vmul.f32 %v1373, %v1429
    %v1434 = vmul.f32 %v1413, %v1430
    %v1435 = vadd.f32 %v1424, %v1433
    %v1436 = vadd.f32 %v1425, %v1434
    %s1437 = scalar_lea.vmem [#allocation15], 8
    %v1438 = vld [vmem:[%s1437] sm:$0x3]
    %v1440 = vperm.slane %v1438, 0
    %v1441 = vperm.slane %v1438, 1
    %v1444 = vadd.f32 %v1435, %v1440
    %v1445 = vadd.f32 %v1436, %v1441
    %s1446 = scalar_lea.vmem [#allocation6], 2048
    %v1447 = vld [vmem:[%s1446] sm:$0xff]
    %v1448 = vld [vmem:[%s1446 + $0x8] sm:$0xff]
    %v1449 = vld [vmem:[%s1446 + $0x10] sm:$0xff]
    %v1450 = vld [vmem:[%s1446 + $0x18] sm:$0xff]
    %v1451 = vld [vmem:[%s1446 + $0x20] sm:$0xff]
    %v1452 = vld [vmem:[%s1446 + $0x28] sm:$0xff]
    %v1453 = vld [vmem:[%s1446 + $0x30] sm:$0xff]
    %v1454 = vld [vmem:[%s1446 + $0x38] sm:$0xff]
    %v1455 = vld [vmem:[%s1446 + $0x40] sm:$0xff]
    %v1456 = vld [vmem:[%s1446 + $0x48] sm:$0xff]
    %v1457 = vld [vmem:[%s1446 + $0x50] sm:$0xff]
    %v1458 = vld [vmem:[%s1446 + $0x58] sm:$0xff]
    %v1459 = vld [vmem:[%s1446 + $0x60] sm:$0xff]
    %v1460 = vld [vmem:[%s1446 + $0x68] sm:$0xff]
    %v1461 = vld [vmem:[%s1446 + $0x70] sm:$0xff]
    %v1462 = vld [vmem:[%s1446 + $0x78] sm:$0xff]
    %v1463 = vld [vmem:[%s1446 + $0x80] sm:$0xff]
    %v1464 = vld [vmem:[%s1446 + $0x88] sm:$0xff]
    %v1465 = vld [vmem:[%s1446 + $0x90] sm:$0xff]
    %v1466 = vld [vmem:[%s1446 + $0x98] sm:$0xff]
    %v1467 = vld [vmem:[%s1446 + $0xa0] sm:$0xff]
    %v1468 = vld [vmem:[%s1446 + $0xa8] sm:$0xff]
    %v1469 = vld [vmem:[%s1446 + $0xb0] sm:$0xff]
    %v1470 = vld [vmem:[%s1446 + $0xb8] sm:$0xff]
    %v1471 = vld [vmem:[%s1446 + $0xc0] sm:$0xff]
    %v1472 = vld [vmem:[%s1446 + $0xc8] sm:$0xff]
    %v1473 = vld [vmem:[%s1446 + $0xd0] sm:$0xff]
    %v1474 = vld [vmem:[%s1446 + $0xd8] sm:$0xff]
    %v1475 = vld [vmem:[%s1446 + $0xe0] sm:$0xff]
    %v1476 = vld [vmem:[%s1446 + $0xe8] sm:$0xff]
    %v1477 = vld [vmem:[%s1446 + $0xf0] sm:$0xff]
    %v1478 = vld [vmem:[%s1446 + $0xf8] sm:$0xff]
    %v1479 = vld [vmem:[%s1446 + $0x100] sm:$0xff]
    %v1480 = vld [vmem:[%s1446 + $0x108] sm:$0xff]
    %v1481 = vld [vmem:[%s1446 + $0x110] sm:$0xff]
    %v1482 = vld [vmem:[%s1446 + $0x118] sm:$0xff]
    %v1483 = vld [vmem:[%s1446 + $0x120] sm:$0xff]
    %v1484 = vld [vmem:[%s1446 + $0x128] sm:$0xff]
    %v1485 = vld [vmem:[%s1446 + $0x130] sm:$0xff]
    %v1486 = vld [vmem:[%s1446 + $0x138] sm:$0xff]
    %v1487 = vld [vmem:[%s1446 + $0x140] sm:$0xff]
    %v1488 = vld [vmem:[%s1446 + $0x148] sm:$0xff]
    %v1489 = vld [vmem:[%s1446 + $0x150] sm:$0xff]
    %v1490 = vld [vmem:[%s1446 + $0x158] sm:$0xff]
    %v1491 = vld [vmem:[%s1446 + $0x160] sm:$0xff]
    %v1492 = vld [vmem:[%s1446 + $0x168] sm:$0xff]
    %v1493 = vld [vmem:[%s1446 + $0x170] sm:$0xff]
    %v1494 = vld [vmem:[%s1446 + $0x178] sm:$0xff]
    %v1495 = vld [vmem:[%s1446 + $0x180] sm:$0xff]
    %v1496 = vld [vmem:[%s1446 + $0x188] sm:$0xff]
    %v1497 = vld [vmem:[%s1446 + $0x190] sm:$0xff]
    %v1498 = vld [vmem:[%s1446 + $0x198] sm:$0xff]
    %v1499 = vld [vmem:[%s1446 + $0x1a0] sm:$0xff]
    %v1500 = vld [vmem:[%s1446 + $0x1a8] sm:$0xff]
    %v1501 = vld [vmem:[%s1446 + $0x1b0] sm:$0xff]
    %v1502 = vld [vmem:[%s1446 + $0x1b8] sm:$0xff]
    %v1503 = vld [vmem:[%s1446 + $0x1c0] sm:$0xff]
    %v1504 = vld [vmem:[%s1446 + $0x1c8] sm:$0xff]
    %v1505 = vld [vmem:[%s1446 + $0x1d0] sm:$0xff]
    %v1506 = vld [vmem:[%s1446 + $0x1d8] sm:$0xff]
    %v1507 = vld [vmem:[%s1446 + $0x1e0] sm:$0xff]
    %v1508 = vld [vmem:[%s1446 + $0x1e8] sm:$0xff]
    %v1509 = vld [vmem:[%s1446 + $0x1f0] sm:$0xff]
    %v1510 = vld [vmem:[%s1446 + $0x1f8] sm:$0xff]
    %s1511 = scalar_lea.vmem [#allocation7], 8
    %v1512 = vld [vmem:[%s1511] sm:$0x3]
    %v1514 = vperm.slane %v1512, 0
    %v1515 = vperm.slane %v1512, 1
    %1518 = vmatpush.msra.mxu0 %v1477
    %1519 = vmatpush.msra.mxu0 %v1475
    %1520 = vmatpush.msra.mxu0 %v1473
    %1521 = vmatpush.msra.mxu0 %v1471
    %1522 = vmatpush.msra.mxu0 %v1469
    %1523 = vmatpush.msra.mxu0 %v1467
    %1524 = vmatpush.msra.mxu0 %v1465
    %1525 = vmatpush.msra.mxu0 %v1463
    %1526 = vmatpush.msra.mxu0 %v1461
    %1527 = vmatpush.msra.mxu0 %v1459
    %1528 = vmatpush.msra.mxu0 %v1457
    %1529 = vmatpush.msra.mxu0 %v1455
    %1530 = vmatpush.msra.mxu0 %v1453
    %1531 = vmatpush.msra.mxu0 %v1451
    %1532 = vmatpush.msra.mxu0 %v1449
    %1533 = vmatpush.msra.mxu0 %v1447
    %1534 = vmatmul.f32.gmra.mxu0 %v1444
    %v1535 = vpop.f32.mrf.mxu0
    %v1536 = vadd.f32 %v1514, %v1535
    %1537 = vdwg.mxu0
    %1538 = vmatpush.msra.mxu0 %v1509
    %1539 = vmatpush.msra.mxu0 %v1507
    %1540 = vmatpush.msra.mxu0 %v1505
    %1541 = vmatpush.msra.mxu0 %v1503
    %1542 = vmatpush.msra.mxu0 %v1501
    %1543 = vmatpush.msra.mxu0 %v1499
    %1544 = vmatpush.msra.mxu0 %v1497
    %1545 = vmatpush.msra.mxu0 %v1495
    %1546 = vmatpush.msra.mxu0 %v1493
    %1547 = vmatpush.msra.mxu0 %v1491
    %1548 = vmatpush.msra.mxu0 %v1489
    %1549 = vmatpush.msra.mxu0 %v1487
    %1550 = vmatpush.msra.mxu0 %v1485
    %1551 = vmatpush.msra.mxu0 %v1483
    %1552 = vmatpush.msra.mxu0 %v1481
    %1553 = vmatpush.msra.mxu0 %v1479
    %1554 = vmatmul.f32.gmra.mxu0 %v1445
    %v1555 = vpop.f32.mrf.mxu0
    %v1556 = vadd.f32 %v1536, %v1555
    %1557 = vdwg.mxu0
    %1558 = vmatpush.msra.mxu0 %v1478
    %1559 = vmatpush.msra.mxu0 %v1476
    %1560 = vmatpush.msra.mxu0 %v1474
    %1561 = vmatpush.msra.mxu0 %v1472
    %1562 = vmatpush.msra.mxu0 %v1470
    %1563 = vmatpush.msra.mxu0 %v1468
    %1564 = vmatpush.msra.mxu0 %v1466
    %1565 = vmatpush.msra.mxu0 %v1464
    %1566 = vmatpush.msra.mxu0 %v1462
    %1567 = vmatpush.msra.mxu0 %v1460
    %1568 = vmatpush.msra.mxu0 %v1458
    %1569 = vmatpush.msra.mxu0 %v1456
    %1570 = vmatpush.msra.mxu0 %v1454
    %1571 = vmatpush.msra.mxu0 %v1452
    %1572 = vmatpush.msra.mxu0 %v1450
    %1573 = vmatpush.msra.mxu0 %v1448
    %1574 = vmatmul.f32.gmra.mxu0 %v1444
    %v1575 = vpop.f32.mrf.mxu0
    %v1576 = vadd.f32 %v1515, %v1575
    %1577 = vdwg.mxu0
    %1578 = vmatpush.msra.mxu0 %v1510
    %1579 = vmatpush.msra.mxu0 %v1508
    %1580 = vmatpush.msra.mxu0 %v1506
    %1581 = vmatpush.msra.mxu0 %v1504
    %1582 = vmatpush.msra.mxu0 %v1502
    %1583 = vmatpush.msra.mxu0 %v1500
    %1584 = vmatpush.msra.mxu0 %v1498
    %1585 = vmatpush.msra.mxu0 %v1496
    %1586 = vmatpush.msra.mxu0 %v1494
    %1587 = vmatpush.msra.mxu0 %v1492
    %1588 = vmatpush.msra.mxu0 %v1490
    %1589 = vmatpush.msra.mxu0 %v1488
    %1590 = vmatpush.msra.mxu0 %v1486
    %1591 = vmatpush.msra.mxu0 %v1484
    %1592 = vmatpush.msra.mxu0 %v1482
    %1593 = vmatpush.msra.mxu0 %v1480
    %1594 = vmatmul.f32.gmra.mxu0 %v1445
    %v1595 = vpop.f32.mrf.mxu0
    %v1596 = vadd.f32 %v1576, %v1595
    %1597 = vdwg.mxu0
    %v1598 = vmax.f32 %v1556, 0.0
    %v1599 = vmax.f32 %v1596, 0.0
    %s1600 = scalar_lea.vmem [#allocation12], 10
    %v1601 = vld [vmem:[%s1600] sm:$0x3]
    %v1603 = vperm.slane %v1601, 0
    %v1604 = vperm.slane %v1601, 1
    %v1607 = vmul.f32 %v1598, %v1603
    %v1608 = vmul.f32 %v1599, %v1604
    %s1609 = scalar_lea.vmem [#allocation13], 10
    %v1610 = vld [vmem:[%s1609] sm:$0x3]
    %v1612 = vperm.slane %v1610, 0
    %v1613 = vperm.slane %v1610, 1
    %v1616 = vmul.f32 %v1556, %v1612
    %v1617 = vmul.f32 %v1596, %v1613
    %v1618 = vadd.f32 %v1607, %v1616
    %v1619 = vadd.f32 %v1608, %v1617
    %s1620 = scalar_lea.vmem [#allocation15], 10
    %v1621 = vld [vmem:[%s1620] sm:$0x3]
    %v1623 = vperm.slane %v1621, 0
    %v1624 = vperm.slane %v1621, 1
    %v1627 = vadd.f32 %v1618, %v1623
    %v1628 = vadd.f32 %v1619, %v1624
    %s1629 = scalar_lea.vmem [#allocation6], 2560
    %v1630 = vld [vmem:[%s1629] sm:$0xff]
    %v1631 = vld [vmem:[%s1629 + $0x8] sm:$0xff]
    %v1632 = vld [vmem:[%s1629 + $0x10] sm:$0xff]
    %v1633 = vld [vmem:[%s1629 + $0x18] sm:$0xff]
    %v1634 = vld [vmem:[%s1629 + $0x20] sm:$0xff]
    %v1635 = vld [vmem:[%s1629 + $0x28] sm:$0xff]
    %v1636 = vld [vmem:[%s1629 + $0x30] sm:$0xff]
    %v1637 = vld [vmem:[%s1629 + $0x38] sm:$0xff]
    %v1638 = vld [vmem:[%s1629 + $0x40] sm:$0xff]
    %v1639 = vld [vmem:[%s1629 + $0x48] sm:$0xff]
    %v1640 = vld [vmem:[%s1629 + $0x50] sm:$0xff]
    %v1641 = vld [vmem:[%s1629 + $0x58] sm:$0xff]
    %v1642 = vld [vmem:[%s1629 + $0x60] sm:$0xff]
    %v1643 = vld [vmem:[%s1629 + $0x68] sm:$0xff]
    %v1644 = vld [vmem:[%s1629 + $0x70] sm:$0xff]
    %v1645 = vld [vmem:[%s1629 + $0x78] sm:$0xff]
    %v1646 = vld [vmem:[%s1629 + $0x80] sm:$0xff]
    %v1647 = vld [vmem:[%s1629 + $0x88] sm:$0xff]
    %v1648 = vld [vmem:[%s1629 + $0x90] sm:$0xff]
    %v1649 = vld [vmem:[%s1629 + $0x98] sm:$0xff]
    %v1650 = vld [vmem:[%s1629 + $0xa0] sm:$0xff]
    %v1651 = vld [vmem:[%s1629 + $0xa8] sm:$0xff]
    %v1652 = vld [vmem:[%s1629 + $0xb0] sm:$0xff]
    %v1653 = vld [vmem:[%s1629 + $0xb8] sm:$0xff]
    %v1654 = vld [vmem:[%s1629 + $0xc0] sm:$0xff]
    %v1655 = vld [vmem:[%s1629 + $0xc8] sm:$0xff]
    %v1656 = vld [vmem:[%s1629 + $0xd0] sm:$0xff]
    %v1657 = vld [vmem:[%s1629 + $0xd8] sm:$0xff]
    %v1658 = vld [vmem:[%s1629 + $0xe0] sm:$0xff]
    %v1659 = vld [vmem:[%s1629 + $0xe8] sm:$0xff]
    %v1660 = vld [vmem:[%s1629 + $0xf0] sm:$0xff]
    %v1661 = vld [vmem:[%s1629 + $0xf8] sm:$0xff]
    %v1662 = vld [vmem:[%s1629 + $0x100] sm:$0xff]
    %v1663 = vld [vmem:[%s1629 + $0x108] sm:$0xff]
    %v1664 = vld [vmem:[%s1629 + $0x110] sm:$0xff]
    %v1665 = vld [vmem:[%s1629 + $0x118] sm:$0xff]
    %v1666 = vld [vmem:[%s1629 + $0x120] sm:$0xff]
    %v1667 = vld [vmem:[%s1629 + $0x128] sm:$0xff]
    %v1668 = vld [vmem:[%s1629 + $0x130] sm:$0xff]
    %v1669 = vld [vmem:[%s1629 + $0x138] sm:$0xff]
    %v1670 = vld [vmem:[%s1629 + $0x140] sm:$0xff]
    %v1671 = vld [vmem:[%s1629 + $0x148] sm:$0xff]
    %v1672 = vld [vmem:[%s1629 + $0x150] sm:$0xff]
    %v1673 = vld [vmem:[%s1629 + $0x158] sm:$0xff]
    %v1674 = vld [vmem:[%s1629 + $0x160] sm:$0xff]
    %v1675 = vld [vmem:[%s1629 + $0x168] sm:$0xff]
    %v1676 = vld [vmem:[%s1629 + $0x170] sm:$0xff]
    %v1677 = vld [vmem:[%s1629 + $0x178] sm:$0xff]
    %v1678 = vld [vmem:[%s1629 + $0x180] sm:$0xff]
    %v1679 = vld [vmem:[%s1629 + $0x188] sm:$0xff]
    %v1680 = vld [vmem:[%s1629 + $0x190] sm:$0xff]
    %v1681 = vld [vmem:[%s1629 + $0x198] sm:$0xff]
    %v1682 = vld [vmem:[%s1629 + $0x1a0] sm:$0xff]
    %v1683 = vld [vmem:[%s1629 + $0x1a8] sm:$0xff]
    %v1684 = vld [vmem:[%s1629 + $0x1b0] sm:$0xff]
    %v1685 = vld [vmem:[%s1629 + $0x1b8] sm:$0xff]
    %v1686 = vld [vmem:[%s1629 + $0x1c0] sm:$0xff]
    %v1687 = vld [vmem:[%s1629 + $0x1c8] sm:$0xff]
    %v1688 = vld [vmem:[%s1629 + $0x1d0] sm:$0xff]
    %v1689 = vld [vmem:[%s1629 + $0x1d8] sm:$0xff]
    %v1690 = vld [vmem:[%s1629 + $0x1e0] sm:$0xff]
    %v1691 = vld [vmem:[%s1629 + $0x1e8] sm:$0xff]
    %v1692 = vld [vmem:[%s1629 + $0x1f0] sm:$0xff]
    %v1693 = vld [vmem:[%s1629 + $0x1f8] sm:$0xff]
    %s1694 = scalar_lea.vmem [#allocation7], 10
    %v1695 = vld [vmem:[%s1694] sm:$0x3]
    %v1697 = vperm.slane %v1695, 0
    %v1698 = vperm.slane %v1695, 1
    %1701 = vmatpush.msra.mxu0 %v1660
    %1702 = vmatpush.msra.mxu0 %v1658
    %1703 = vmatpush.msra.mxu0 %v1656
    %1704 = vmatpush.msra.mxu0 %v1654
    %1705 = vmatpush.msra.mxu0 %v1652
    %1706 = vmatpush.msra.mxu0 %v1650
    %1707 = vmatpush.msra.mxu0 %v1648
    %1708 = vmatpush.msra.mxu0 %v1646
    %1709 = vmatpush.msra.mxu0 %v1644
    %1710 = vmatpush.msra.mxu0 %v1642
    %1711 = vmatpush.msra.mxu0 %v1640
    %1712 = vmatpush.msra.mxu0 %v1638
    %1713 = vmatpush.msra.mxu0 %v1636
    %1714 = vmatpush.msra.mxu0 %v1634
    %1715 = vmatpush.msra.mxu0 %v1632
    %1716 = vmatpush.msra.mxu0 %v1630
    %1717 = vmatmul.f32.gmra.mxu0 %v1627
    %v1718 = vpop.f32.mrf.mxu0
    %v1719 = vadd.f32 %v1697, %v1718
    %1720 = vdwg.mxu0
    %1721 = vmatpush.msra.mxu0 %v1692
    %1722 = vmatpush.msra.mxu0 %v1690
    %1723 = vmatpush.msra.mxu0 %v1688
    %1724 = vmatpush.msra.mxu0 %v1686
    %1725 = vmatpush.msra.mxu0 %v1684
    %1726 = vmatpush.msra.mxu0 %v1682
    %1727 = vmatpush.msra.mxu0 %v1680
    %1728 = vmatpush.msra.mxu0 %v1678
    %1729 = vmatpush.msra.mxu0 %v1676
    %1730 = vmatpush.msra.mxu0 %v1674
    %1731 = vmatpush.msra.mxu0 %v1672
    %1732 = vmatpush.msra.mxu0 %v1670
    %1733 = vmatpush.msra.mxu0 %v1668
    %1734 = vmatpush.msra.mxu0 %v1666
    %1735 = vmatpush.msra.mxu0 %v1664
    %1736 = vmatpush.msra.mxu0 %v1662
    %1737 = vmatmul.f32.gmra.mxu0 %v1628
    %v1738 = vpop.f32.mrf.mxu0
    %v1739 = vadd.f32 %v1719, %v1738
    %1740 = vdwg.mxu0
    %1741 = vmatpush.msra.mxu0 %v1661
    %1742 = vmatpush.msra.mxu0 %v1659
    %1743 = vmatpush.msra.mxu0 %v1657
    %1744 = vmatpush.msra.mxu0 %v1655
    %1745 = vmatpush.msra.mxu0 %v1653
    %1746 = vmatpush.msra.mxu0 %v1651
    %1747 = vmatpush.msra.mxu0 %v1649
    %1748 = vmatpush.msra.mxu0 %v1647
    %1749 = vmatpush.msra.mxu0 %v1645
    %1750 = vmatpush.msra.mxu0 %v1643
    %1751 = vmatpush.msra.mxu0 %v1641
    %1752 = vmatpush.msra.mxu0 %v1639
    %1753 = vmatpush.msra.mxu0 %v1637
    %1754 = vmatpush.msra.mxu0 %v1635
    %1755 = vmatpush.msra.mxu0 %v1633
    %1756 = vmatpush.msra.mxu0 %v1631
    %1757 = vmatmul.f32.gmra.mxu0 %v1627
    %v1758 = vpop.f32.mrf.mxu0
    %v1759 = vadd.f32 %v1698, %v1758
    %1760 = vdwg.mxu0
    %1761 = vmatpush.msra.mxu0 %v1693
    %1762 = vmatpush.msra.mxu0 %v1691
    %1763 = vmatpush.msra.mxu0 %v1689
    %1764 = vmatpush.msra.mxu0 %v1687
    %1765 = vmatpush.msra.mxu0 %v1685
    %1766 = vmatpush.msra.mxu0 %v1683
    %1767 = vmatpush.msra.mxu0 %v1681
    %1768 = vmatpush.msra.mxu0 %v1679
    %1769 = vmatpush.msra.mxu0 %v1677
    %1770 = vmatpush.msra.mxu0 %v1675
    %1771 = vmatpush.msra.mxu0 %v1673
    %1772 = vmatpush.msra.mxu0 %v1671
    %1773 = vmatpush.msra.mxu0 %v1669
    %1774 = vmatpush.msra.mxu0 %v1667
    %1775 = vmatpush.msra.mxu0 %v1665
    %1776 = vmatpush.msra.mxu0 %v1663
    %1777 = vmatmul.f32.gmra.mxu0 %v1628
    %v1778 = vpop.f32.mrf.mxu0
    %v1779 = vadd.f32 %v1759, %v1778
    %1780 = vdwg.mxu0
    %v1781 = vmax.f32 %v1739, 0.0
    %v1782 = vmax.f32 %v1779, 0.0
    %s1783 = scalar_lea.vmem [#allocation12], 12
    %v1784 = vld [vmem:[%s1783] sm:$0x3]
    %v1786 = vperm.slane %v1784, 0
    %v1787 = vperm.slane %v1784, 1
    %v1790 = vmul.f32 %v1781, %v1786
    %v1791 = vmul.f32 %v1782, %v1787
    %s1792 = scalar_lea.vmem [#allocation13], 12
    %v1793 = vld [vmem:[%s1792] sm:$0x3]
    %v1795 = vperm.slane %v1793, 0
    %v1796 = vperm.slane %v1793, 1
    %v1799 = vmul.f32 %v1739, %v1795
    %v1800 = vmul.f32 %v1779, %v1796
    %v1801 = vadd.f32 %v1790, %v1799
    %v1802 = vadd.f32 %v1791, %v1800
    %s1803 = scalar_lea.vmem [#allocation15], 12
    %v1804 = vld [vmem:[%s1803] sm:$0x3]
    %v1806 = vperm.slane %v1804, 0
    %v1807 = vperm.slane %v1804, 1
    %v1810 = vadd.f32 %v1801, %v1806
    %v1811 = vadd.f32 %v1802, %v1807
    %v1812 = vld [vmem:[#allocation9] sm:$0xff]
    %v1813 = vld [vmem:[#allocation9 + $0x8] sm:$0xff]
    %v1814 = vld [vmem:[#allocation9 + $0x10] sm:$0xff]
    %v1815 = vld [vmem:[#allocation9 + $0x18] sm:$0xff]
    %v1816 = vld [vmem:[#allocation9 + $0x20] sm:$0xff]
    %v1817 = vld [vmem:[#allocation9 + $0x28] sm:$0xff]
    %v1818 = vld [vmem:[#allocation9 + $0x30] sm:$0xff]
    %v1819 = vld [vmem:[#allocation9 + $0x38] sm:$0xff]
    %v1820 = vld [vmem:[#allocation9 + $0x40] sm:$0xff]
    %v1821 = vld [vmem:[#allocation9 + $0x48] sm:$0xff]
    %v1822 = vld [vmem:[#allocation9 + $0x50] sm:$0xff]
    %v1823 = vld [vmem:[#allocation9 + $0x58] sm:$0xff]
    %v1824 = vld [vmem:[#allocation9 + $0x60] sm:$0xff]
    %v1825 = vld [vmem:[#allocation9 + $0x68] sm:$0xff]
    %v1826 = vld [vmem:[#allocation9 + $0x70] sm:$0xff]
    %v1827 = vld [vmem:[#allocation9 + $0x78] sm:$0xff]
    %v1828 = vld [vmem:[#allocation9 + $0x80] sm:$0xff]
    %v1829 = vld [vmem:[#allocation9 + $0x88] sm:$0xff]
    %v1830 = vld [vmem:[#allocation9 + $0x90] sm:$0xff]
    %v1831 = vld [vmem:[#allocation9 + $0x98] sm:$0xff]
    %v1832 = vld [vmem:[#allocation9 + $0xa0] sm:$0xff]
    %v1833 = vld [vmem:[#allocation9 + $0xa8] sm:$0xff]
    %v1834 = vld [vmem:[#allocation9 + $0xb0] sm:$0xff]
    %v1835 = vld [vmem:[#allocation9 + $0xb8] sm:$0xff]
    %v1836 = vld [vmem:[#allocation9 + $0xc0] sm:$0xff]
    %v1837 = vld [vmem:[#allocation9 + $0xc8] sm:$0xff]
    %v1838 = vld [vmem:[#allocation9 + $0xd0] sm:$0xff]
    %v1839 = vld [vmem:[#allocation9 + $0xd8] sm:$0xff]
    %v1840 = vld [vmem:[#allocation9 + $0xe0] sm:$0xff]
    %v1841 = vld [vmem:[#allocation9 + $0xe8] sm:$0xff]
    %v1842 = vld [vmem:[#allocation9 + $0xf0] sm:$0xff]
    %v1843 = vld [vmem:[#allocation9 + $0xf8] sm:$0xff]
    %v1844 = vld [vmem:[#allocation10] sm:$0x1]
    %v1846 = vperm.slane %v1844, 0
    %1848 = vmatpush.msra.mxu0 %v1827
    %1849 = vmatpush.msra.mxu0 %v1826
    %1850 = vmatpush.msra.mxu0 %v1825
    %1851 = vmatpush.msra.mxu0 %v1824
    %1852 = vmatpush.msra.mxu0 %v1823
    %1853 = vmatpush.msra.mxu0 %v1822
    %1854 = vmatpush.msra.mxu0 %v1821
    %1855 = vmatpush.msra.mxu0 %v1820
    %1856 = vmatpush.msra.mxu0 %v1819
    %1857 = vmatpush.msra.mxu0 %v1818
    %1858 = vmatpush.msra.mxu0 %v1817
    %1859 = vmatpush.msra.mxu0 %v1816
    %1860 = vmatpush.msra.mxu0 %v1815
    %1861 = vmatpush.msra.mxu0 %v1814
    %1862 = vmatpush.msra.mxu0 %v1813
    %1863 = vmatpush.msra.mxu0 %v1812
    %1864 = vmatmul.f32.gmra.mxu0 %v1810
    %v1865 = vpop.f32.mrf.mxu0
    %v1866 = vadd.f32 %v1846, %v1865
    %1867 = vdwg.mxu0
    %1868 = vmatpush.msra.mxu0 %v1843
    %1869 = vmatpush.msra.mxu0 %v1842
    %1870 = vmatpush.msra.mxu0 %v1841
    %1871 = vmatpush.msra.mxu0 %v1840
    %1872 = vmatpush.msra.mxu0 %v1839
    %1873 = vmatpush.msra.mxu0 %v1838
    %1874 = vmatpush.msra.mxu0 %v1837
    %1875 = vmatpush.msra.mxu0 %v1836
    %1876 = vmatpush.msra.mxu0 %v1835
    %1877 = vmatpush.msra.mxu0 %v1834
    %1878 = vmatpush.msra.mxu0 %v1833
    %1879 = vmatpush.msra.mxu0 %v1832
    %1880 = vmatpush.msra.mxu0 %v1831
    %1881 = vmatpush.msra.mxu0 %v1830
    %1882 = vmatpush.msra.mxu0 %v1829
    %1883 = vmatpush.msra.mxu0 %v1828
    %1884 = vmatmul.f32.gmra.mxu0 %v1811
    %v1885 = vpop.f32.mrf.mxu0
    %v1886 = vadd.f32 %v1866, %v1885
    %1887 = vdwg.mxu0
    %1888 = vst [vmem:[%s10] sm:$0xff] %v1886
    // Predicated region
    $region78: #{forward.1} parent=1 // pred_check
      _
    $region79: #{forward.1} parent=1 // pred_check_branch
      %1890 = sbr.rel (0) target = $region81
    $region80: #{forward.1} parent=1 // pred_region
      _
    $region81: #{forward.1} parent=1 // pred_fallthru
      _
    // Predicated region
    $region82: #{forward.1} parent=1 // pred_check
      _
    $region83: #{forward.1} parent=1 // pred_check_branch
      %1892 = sbr.rel (0) target = $region85
    $region84: #{forward.1} parent=1 // pred_region
      _
    $region85: #{forward.1} parent=1 // pred_fallthru
      _
    %1893 = vsyncpa [#allocation3], 1
    %1894 = vsyncpa [#allocation5], 1
    %1895 = vsyncpa [#allocation8], 1
    %1896 = vsyncpa [#allocation11], 1
    %1897 = vsyncpa [#allocation14], 1

</llo_original>
